<compile_context>
chip_gen: v6e
topology: v6e:2x2x1
jax: 0.10.0
libtpu: 0.0.40
codegen_flags: <defaults>
</compile_context>

<pallas_src>
import functools

import jax
import jax.numpy as jnp
from jax.experimental import pallas as pl
from jax.experimental.pallas import tpu as pltpu

NEG_INF = -1e9


def _layernorm_f32(x, g, b, eps=1e-5):
    mean = jnp.mean(x, axis=-1, keepdims=True)
    xc = x - mean
    var = jnp.mean(xc * xc, axis=-1, keepdims=True)
    return xc * jax.lax.rsqrt(var + eps) * g + b


# ----------------------------------------------------------------------------
# Fused encoder-layer kernel (one grid step = Bt batch elements)
# ----------------------------------------------------------------------------

def _encoder_layer_kernel(src_ref, pos_ref, bias_ref,
                          wqk_ref, bqk_ref, wv_ref, bv_ref,
                          wo_ref, bo_ref,
                          n1g_ref, n1b_ref,
                          w1_ref, b1_ref, w2_ref, b2_ref,
                          n2g_ref, n2b_ref,
                          out_ref, attn_scr, *, nhead):
    Bt, L, E = src_ref.shape
    Dh = E // nhead
    R = Bt * L

    src = src_ref[...].astype(jnp.float32).reshape(R, E)           # residual stream (f32)
    qk_in = src + pos_ref[...].astype(jnp.float32).reshape(R, E)   # q = k = src + pos

    # Fused Q/K projection (one (R,E)x(E,2E) matmul) and V projection.
    # 1/sqrt(Dh) is already folded into the Q half of wqk / bqk at init.
    qk = jnp.dot(qk_in.astype(jnp.bfloat16), wqk_ref[...],
                 preferred_element_type=jnp.float32) + bqk_ref[...]     # (R, 2E)
    v = jnp.dot(src.astype(jnp.bfloat16), wv_ref[...],
                preferred_element_type=jnp.float32) + bv_ref[...]       # (R, E)

    qk16 = qk.astype(jnp.bfloat16)        # single cast, sliced per batch / head below
    v16 = v.astype(jnp.bfloat16)
    bias = bias_ref[...]                  # (Bt, 1, L) additive key-padding bias

    nt = (((1,), (1,)), ((), ()))         # contract last dims: q @ k^T without kh.T

    for bi in range(Bt):
        rows = slice(bi * L, (bi + 1) * L)
        bias_full = jnp.broadcast_to(bias[bi], (L, L))   # hoisted out of the head loop
        q_b = qk16[rows, :E]
        k_b = qk16[rows, E:]
        v_b = v16[rows, :]
        for h in range(nhead):
            cols = slice(h * Dh, (h + 1) * Dh)
            s = jax.lax.dot_general(q_b[:, cols], k_b[:, cols], nt,
                                    preferred_element_type=jnp.float32) + bias_full
            m = jnp.max(s, axis=-1, keepdims=True)
            p = jnp.exp(s - m)                           # unnormalized, in [0, 1]
            denom = jnp.sum(p, axis=-1, keepdims=True)
            o_h = jnp.dot(p.astype(jnp.bfloat16), v_b[:, cols],
                          preferred_element_type=jnp.float32)
            # Normalize AFTER the PV matmul: scales (L, Dh) instead of (L, L).
            # NOTE: rows whose keys are all padded give denom~0 -> inf/NaN,
            # same failure mode as PyTorch softmax over an all-masked row.
            attn_scr[rows, cols] = o_h * pl.reciprocal(denom, approx=True)

    # Output projection + residual + LayerNorm1 (fused epilogue).
    attn = jnp.dot(attn_scr[...].astype(jnp.bfloat16), wo_ref[...],
                   preferred_element_type=jnp.float32) + bo_ref[...]
    x = _layernorm_f32(src + attn, n1g_ref[...], n1b_ref[...])

    # FFN: linear1 + ReLU, linear2, residual, LayerNorm2 (dropouts = identity).
    h1 = jnp.dot(x.astype(jnp.bfloat16), w1_ref[...],
                 preferred_element_type=jnp.float32) + b1_ref[...]
    h1 = jnp.maximum(h1, 0.0)
    h2 = jnp.dot(h1.astype(jnp.bfloat16), w2_ref[...],
                 preferred_element_type=jnp.float32) + b2_ref[...]
    x = _layernorm_f32(x + h2, n2g_ref[...], n2b_ref[...])

    out_ref[...] = x.reshape(Bt, L, E).astype(out_ref.dtype)


# ----------------------------------------------------------------------------
# Generation-aware tiling / VMEM budget
# ----------------------------------------------------------------------------

def _vmem_estimate(bt, L, E, F, nhead):
    del nhead  # score/prob live set bounded by a few (L, L) tensors regardless
    f32, bf16 = 4, 2
    rows = bt * L
    io = 2 * (3 * rows * E + bt * L) * f32                       # dbl-buffered src/pos/out + bias
    wbytes = (2 * E * E + 2 * E * E + E * F + F * E) * bf16 \
             + (9 * E + F) * f32
    weights = 2 * wbytes                                         # default double-buffering
    scratch = rows * E * f32
    inter = (rows * (2 * E + 5 * E + F) + 4 * L * L) * f32       # qk, v/x/attn/h2, h1, scores
    return int(1.25 * (io + weights + scratch + inter))


def _select_tiling(B, L, E, F, nhead):
    try:
        info = pltpu.get_tpu_info()
        phys = int(getattr(info, "vmem_capacity_bytes", 0) or 0)
    except Exception:
        phys = 0
    if phys <= 0:
        phys = 64 << 20                  # conservative default (v7x-sized VMEM)
    # ~48 MiB budget on v7x (64 MiB physical), ~100 MiB on v5e/v6e (128 MiB),
    # always leaving compiler headroom.
    budget = max(min(phys - (16 << 20), 100 << 20), 16 << 20)

    divisors = [d for d in range(B, 0, -1) if B % d == 0]
    fitting = [d for d in divisors
               if _vmem_estimate(d, L, E, F, nhead) <= budget] or [1]
    bt = fitting[0]
    # Prefer >=2 grid steps (megacore split on v7x) when the per-step MXU M
    # dimension stays comfortably large.
    for d in fitting:
        if B // d >= 2 and d * L >= 256:
            bt = d
            break
    return bt, int(budget)


@functools.lru_cache(maxsize=None)
def _encoder_layer_call(B, L, E, F, nhead):
    Bt, vmem_limit = _select_tiling(B, L, E, F, nhead)
    kernel = functools.partial(_encoder_layer_kernel, nhead=nhead)

    batch_spec = pl.BlockSpec((Bt, L, E), lambda b: (b, 0, 0))
    bias_spec = pl.BlockSpec((Bt, 1, L), lambda b: (b, 0, 0))

    def const(shape):
        zero = (0,) * len(shape)
        # Constant index_map -> fetched once; still double-buffered by default
        # (pl.Buffered(1) would halve their VMEM footprint but is omitted for
        # portability).
        return pl.BlockSpec(shape, lambda b, _z=zero: _z)

    return pl.pallas_call(
        kernel,
        out_shape=jax.ShapeDtypeStruct((B, L, E), jnp.float32),
        grid=(B // Bt,),
        in_specs=[
            batch_spec,                  # src        (B, L, E)
            batch_spec,                  # pos        (B, L, E)
            bias_spec,                   # key-padding additive bias (B, 1, L)
            const((E, 2 * E)),           # wqk (pre-transposed, Q half pre-scaled, bf16)
            const((1, 2 * E)),           # bqk
            const((E, E)),               # wv
            const((1, E)),               # bv
            const((E, E)),               # wo
            const((1, E)),               # bo
            const((1, E)),               # norm1 gamma
            const((1, E)),               # norm1 beta
            const((E, F)),               # w1
            const((1, F)),               # b1
            const((F, E)),               # w2
            const((1, E)),               # b2
            const((1, E)),               # norm2 gamma
            const((1, E)),               # norm2 beta
        ],
        out_specs=batch_spec,
        scratch_shapes=[pltpu.VMEM((Bt * L, E), jnp.float32)],   # lane-dense head assembly
        compiler_params=pltpu.CompilerParams(
            dimension_semantics=("parallel",),
            vmem_limit_bytes=vmem_limit,
        ),
    )


# ----------------------------------------------------------------------------
# Python wrapper (PyTorch TransformerEncoderLayer.forward_post semantics)
# ----------------------------------------------------------------------------

def transformer_encoder_layer(params, src, *, pos=None, src_mask=None,
                              src_key_padding_mask=None, nhead):
    """src: (L, B, E); pos: (L, B, E) or None; mask: (B, L) bool (True = pad).

    Returns (L, B, E). Dropout layers are identity (inference).
    """
    if src_mask is not None:
        # TODO(synk): attn_mask (src_mask) is not wired; it is None in DETR usage.
        raise NotImplementedError("src_mask (attn_mask) is not supported")
    L, B, E = src.shape
    F = params["w1"].shape[1]
    if pos is None:
        pos = jnp.zeros_like(src)
    if src_key_padding_mask is None:
        bias = jnp.zeros((B, 1, L), jnp.float32)
    else:
        bias = jnp.where(src_key_padding_mask, NEG_INF, 0.0
                         ).astype(jnp.float32).reshape(B, 1, L)

    # TODO(synk): reading the native (L, B, E) layout directly via BlockSpec
    # would drop these two input transposes + the output transpose (3 HBM
    # activation passes); kept batch-major in-kernel for contiguous per-element
    # row blocks in the flattened (Bt*L, E) slab.
    src_b = jnp.transpose(src, (1, 0, 2)).astype(jnp.float32)     # (B, L, E)
    pos_b = jnp.transpose(pos, (1, 0, 2)).astype(jnp.float32)

    out_b = _encoder_layer_call(B, L, E, F, nhead)(
        src_b, pos_b, bias,
        params["wqk"], params["bqk"], params["wv"], params["bv"],
        params["wo"], params["bo"],
        params["n1_g"], params["n1_b"],
        params["w1"], params["b1"], params["w2"], params["b2"],
        params["n2_g"], params["n2_b"],
    )
    return jnp.transpose(out_b, (1, 0, 2))                        # (L, B, E)


# ----------------------------------------------------------------------------
# Parameter init (xavier_uniform like PyTorch MultiheadAttention / Linear)
# ----------------------------------------------------------------------------

def _xavier(key, shape):
    fan_out, fan_in = shape
    limit = (6.0 / (fan_in + fan_out)) ** 0.5
    return jax.random.uniform(key, shape, jnp.float32, -limit, limit)


def init_encoder_layer(key, d_model, nhead, dim_feedforward):
    k_in, k_out, k_l1, k_l2 = jax.random.split(key, 4)
    in_w = _xavier(k_in, (3 * d_model, d_model))          # PyTorch in_proj (out, in)
    scale = float((d_model // nhead) ** -0.5)
    wq = in_w[:d_model].T * scale                         # fold 1/sqrt(Dh) into Q weights
    wk = in_w[d_model:2 * d_model].T
    wv = in_w[2 * d_model:].T
    bq = jnp.zeros((d_model,), jnp.float32) * scale       # fold applies to bq as well
    bk = jnp.zeros((d_model,), jnp.float32)
    out_w = _xavier(k_out, (d_model, d_model))
    l1_w = _xavier(k_l1, (dim_feedforward, d_model))
    l2_w = _xavier(k_l2, (d_model, dim_feedforward))
    wdt = jnp.bfloat16                                    # matmul-operand storage
    return dict(
        wqk=jnp.concatenate([wq, wk], axis=1).astype(wdt),           # (E, 2E)
        bqk=jnp.concatenate([bq, bk]).reshape(1, 2 * d_model),
        wv=wv.astype(wdt), bv=jnp.zeros((1, d_model), jnp.float32),
        wo=out_w.T.astype(wdt), bo=jnp.zeros((1, d_model), jnp.float32),
        w1=l1_w.T.astype(wdt), b1=jnp.zeros((1, dim_feedforward), jnp.float32),
        w2=l2_w.T.astype(wdt), b2=jnp.zeros((1, d_model), jnp.float32),
        n1_g=jnp.ones((1, d_model), jnp.float32),
        n1_b=jnp.zeros((1, d_model), jnp.float32),
        n2_g=jnp.ones((1, d_model), jnp.float32),
        n2_b=jnp.zeros((1, d_model), jnp.float32),
    )


# ----------------------------------------------------------------------------
# Pure-JAX reference (f32 math on the same bf16-rounded, pre-scaled weights)
# ----------------------------------------------------------------------------

def _reference(params, src, pos, key_padding_mask, nhead):
    L, B, E = src.shape
    Dh = E // nhead
    f = lambda w: w.astype(jnp.float32)
    qk_in = src + pos
    qk = jnp.einsum("lbe,ef->lbf", qk_in, f(params["wqk"])) + params["bqk"][0]
    v = jnp.einsum("lbe,ef->lbf", src, f(params["wv"])) + params["bv"][0]
    q = qk[..., :E].reshape(L, B, nhead, Dh)          # scale folded into wqk already
    k = qk[..., E:].reshape(L, B, nhead, Dh)
    vh = v.reshape(L, B, nhead, Dh)
    s = jnp.einsum("qbhd,kbhd->bhqk", q, k)
    if key_padding_mask is not None:
        s = s + jnp.where(key_padding_mask, NEG_INF, 0.0)[:, None, None, :]
    a = jax.nn.softmax(s, axis=-1)
    attn = jnp.einsum("bhqk,kbhd->qbhd", a, vh).reshape(L, B, E)
    attn = jnp.einsum("lbe,ef->lbf", attn, f(params["wo"])) + params["bo"][0]
    x = _layernorm_f32(src + attn, params["n1_g"][0], params["n1_b"][0])
    h = jnp.maximum(jnp.einsum("lbe,ef->lbf", x, f(params["w1"])) + params["b1"][0], 0.0)
    h = jnp.einsum("lbf,fe->lbe", h, f(params["w2"])) + params["b2"][0]
    return _layernorm_f32(x + h, params["n2_g"][0], params["n2_b"][0])


# ----------------------------------------------------------------------------
# main
# ----------------------------------------------------------------------------

if __name__ == "__main__":
    d_model, nhead, dim_feedforward = 32, 4, 64
    bs, h, w = 2, 4, 4
    L = h * w  # 16 (flattened spatial positions, DETR-style)

    root = jax.random.PRNGKey(0)
    k_par, k_src, k_pos = jax.random.split(root, 3)

    params = init_encoder_layer(k_par, d_model, nhead, dim_feedforward)
    src = jax.random.normal(k_src, (L, bs, d_model), jnp.float32)
    pos = jax.random.normal(k_pos, (L, bs, d_model), jnp.float32)
    # Pad the last key position of batch element 1.
    key_padding_mask = jnp.zeros((bs, L), dtype=bool).at[1, L - 1].set(True)

    fwd = jax.jit(functools.partial(transformer_encoder_layer, nhead=nhead))
    out = fwd(params, src, pos=pos, src_key_padding_mask=key_padding_mask)
    jax.block_until_ready(out)

    assert out.shape == (L, bs, d_model)
    assert bool(jnp.isfinite(out).all())

    ref = _reference(params, src, pos, key_padding_mask, nhead)
    max_err = float(jnp.max(jnp.abs(out - ref)))
    assert max_err < 0.25, f"max |pallas - reference| = {max_err}"

    print("KERNEL_OK")
</pallas_src>

<mosaic_0001>
module attributes {stable_mosaic.version = 11 : i64} {
  func.func @_encoder_layer_kernel(%arg0: i32, %arg1: memref<2x16x32xf32, #tpu.memory_space<vmem>>, %arg2: memref<2x16x32xf32, #tpu.memory_space<vmem>>, %arg3: memref<2x1x16xf32, #tpu.memory_space<vmem>>, %arg4: memref<32x64xbf16, #tpu.memory_space<vmem>>, %arg5: memref<1x64xf32, #tpu.memory_space<vmem>>, %arg6: memref<32x32xbf16, #tpu.memory_space<vmem>>, %arg7: memref<1x32xf32, #tpu.memory_space<vmem>>, %arg8: memref<32x32xbf16, #tpu.memory_space<vmem>>, %arg9: memref<1x32xf32, #tpu.memory_space<vmem>>, %arg10: memref<1x32xf32, #tpu.memory_space<vmem>>, %arg11: memref<1x32xf32, #tpu.memory_space<vmem>>, %arg12: memref<32x64xbf16, #tpu.memory_space<vmem>>, %arg13: memref<1x64xf32, #tpu.memory_space<vmem>>, %arg14: memref<64x32xbf16, #tpu.memory_space<vmem>>, %arg15: memref<1x32xf32, #tpu.memory_space<vmem>>, %arg16: memref<1x32xf32, #tpu.memory_space<vmem>>, %arg17: memref<1x32xf32, #tpu.memory_space<vmem>>, %arg18: memref<2x16x32xf32, #tpu.memory_space<vmem>>, %arg19: memref<32x32xf32, #tpu.memory_space<vmem>>) attributes {dimension_semantics = [#tpu.dimension_semantics<parallel>], iteration_bounds = array<i64: 1>, scalar_prefetch = 0 : i64, scratch_operands = 1 : i64, tpu.core_type = #tpu.core_type<tc>, window_params = [{transform_indices = @transform_0, window_bounds = array<i64: 2, 16, 32>}, {transform_indices = @transform_1, window_bounds = array<i64: 2, 16, 32>}, {transform_indices = @transform_2, window_bounds = array<i64: 2, 1, 16>}, {pipeline_mode = #tpu.pipeline_mode<synchronous>, transform_indices = @transform_3, window_bounds = array<i64: 32, 64>}, {pipeline_mode = #tpu.pipeline_mode<synchronous>, transform_indices = @transform_4, window_bounds = array<i64: 1, 64>}, {pipeline_mode = #tpu.pipeline_mode<synchronous>, transform_indices = @transform_5, window_bounds = array<i64: 32, 32>}, {pipeline_mode = #tpu.pipeline_mode<synchronous>, transform_indices = @transform_6, window_bounds = array<i64: 1, 32>}, {pipeline_mode = #tpu.pipeline_mode<synchronous>, transform_indices = @transform_7, window_bounds = array<i64: 32, 32>}, {pipeline_mode = #tpu.pipeline_mode<synchronous>, transform_indices = @transform_8, window_bounds = array<i64: 1, 32>}, {pipeline_mode = #tpu.pipeline_mode<synchronous>, transform_indices = @transform_9, window_bounds = array<i64: 1, 32>}, {pipeline_mode = #tpu.pipeline_mode<synchronous>, transform_indices = @transform_10, window_bounds = array<i64: 1, 32>}, {pipeline_mode = #tpu.pipeline_mode<synchronous>, transform_indices = @transform_11, window_bounds = array<i64: 32, 64>}, {pipeline_mode = #tpu.pipeline_mode<synchronous>, transform_indices = @transform_12, window_bounds = array<i64: 1, 64>}, {pipeline_mode = #tpu.pipeline_mode<synchronous>, transform_indices = @transform_13, window_bounds = array<i64: 64, 32>}, {pipeline_mode = #tpu.pipeline_mode<synchronous>, transform_indices = @transform_14, window_bounds = array<i64: 1, 32>}, {pipeline_mode = #tpu.pipeline_mode<synchronous>, transform_indices = @transform_15, window_bounds = array<i64: 1, 32>}, {pipeline_mode = #tpu.pipeline_mode<synchronous>, transform_indices = @transform_16, window_bounds = array<i64: 1, 32>}, {transform_indices = @transform_17, window_bounds = array<i64: 2, 16, 32>}]} {
    %c0 = arith.constant 0 : index
    %c0_0 = arith.constant 0 : index
    %c0_1 = arith.constant 0 : index
    %0 = vector.load %arg1[%c0, %c0_0, %c0_1] : memref<2x16x32xf32, #tpu.memory_space<vmem>>, vector<2x16x32xf32>
    %1 = vector.shape_cast %0 : vector<2x16x32xf32> to vector<32x32xf32>
    %c0_2 = arith.constant 0 : index
    %c0_3 = arith.constant 0 : index
    %c0_4 = arith.constant 0 : index
    %2 = vector.load %arg2[%c0_2, %c0_3, %c0_4] : memref<2x16x32xf32, #tpu.memory_space<vmem>>, vector<2x16x32xf32>
    %3 = vector.shape_cast %2 : vector<2x16x32xf32> to vector<32x32xf32>
    %4 = arith.addf %1, %3 : vector<32x32xf32>
    %5 = arith.truncf %4 : vector<32x32xf32> to vector<32x32xbf16>
    %c0_5 = arith.constant 0 : index
    %c0_6 = arith.constant 0 : index
    %6 = vector.load %arg4[%c0_5, %c0_6] : memref<32x64xbf16, #tpu.memory_space<vmem>>, vector<32x64xbf16>
    %cst = arith.constant dense<0.000000e+00> : vector<32x64xf32>
    %7 = tpu.matmul %5, %6, %cst {dimension_numbers = #tpu.dot_dimension_numbers<[1], [0], [0], [1], [0, 0, 1, 1], [], []>} : vector<32x32xbf16>, vector<32x64xbf16>, vector<32x64xf32> -> vector<32x64xf32>
    %c0_7 = arith.constant 0 : index
    %c0_8 = arith.constant 0 : index
    %8 = vector.load %arg5[%c0_7, %c0_8] : memref<1x64xf32, #tpu.memory_space<vmem>>, vector<1x64xf32>
    %9 = vector.broadcast %8 : vector<1x64xf32> to vector<32x64xf32>
    %10 = arith.addf %7, %9 : vector<32x64xf32>
    %11 = arith.truncf %1 : vector<32x32xf32> to vector<32x32xbf16>
    %c0_9 = arith.constant 0 : index
    %c0_10 = arith.constant 0 : index
    %12 = vector.load %arg6[%c0_9, %c0_10] : memref<32x32xbf16, #tpu.memory_space<vmem>>, vector<32x32xbf16>
    %cst_11 = arith.constant dense<0.000000e+00> : vector<32x32xf32>
    %13 = tpu.matmul %11, %12, %cst_11 {dimension_numbers = #tpu.dot_dimension_numbers<[1], [0], [0], [1], [0, 0, 1, 1], [], []>} : vector<32x32xbf16>, vector<32x32xbf16>, vector<32x32xf32> -> vector<32x32xf32>
    %c0_12 = arith.constant 0 : index
    %c0_13 = arith.constant 0 : index
    %14 = vector.load %arg7[%c0_12, %c0_13] : memref<1x32xf32, #tpu.memory_space<vmem>>, vector<1x32xf32>
    %15 = vector.broadcast %14 : vector<1x32xf32> to vector<32x32xf32>
    %16 = arith.addf %13, %15 : vector<32x32xf32>
    %17 = arith.truncf %10 : vector<32x64xf32> to vector<32x64xbf16>
    %18 = arith.truncf %16 : vector<32x32xf32> to vector<32x32xbf16>
    %c0_14 = arith.constant 0 : index
    %c0_15 = arith.constant 0 : index
    %c0_16 = arith.constant 0 : index
    %19 = vector.load %arg3[%c0_14, %c0_15, %c0_16] : memref<2x1x16xf32, #tpu.memory_space<vmem>>, vector<2x1x16xf32>
    %20 = vector.extract_strided_slice %19 {offsets = [0, 0, 0], sizes = [1, 1, 16], strides = [1, 1, 1]} : vector<2x1x16xf32> to vector<1x1x16xf32>
    %21 = vector.shape_cast %20 : vector<1x1x16xf32> to vector<1x16xf32>
    %22 = vector.shape_cast %21 : vector<1x16xf32> to vector<1x16xf32>
    %23 = vector.broadcast %22 : vector<1x16xf32> to vector<16x16xf32>
    %24 = vector.extract_strided_slice %17 {offsets = [0, 0], sizes = [16, 32], strides = [1, 1]} : vector<32x64xbf16> to vector<16x32xbf16>
    %25 = vector.extract_strided_slice %17 {offsets = [0, 32], sizes = [16, 32], strides = [1, 1]} : vector<32x64xbf16> to vector<16x32xbf16>
    %26 = vector.extract_strided_slice %18 {offsets = [0, 0], sizes = [16, 32], strides = [1, 1]} : vector<32x32xbf16> to vector<16x32xbf16>
    %27 = vector.extract_strided_slice %24 {offsets = [0, 0], sizes = [16, 8], strides = [1, 1]} : vector<16x32xbf16> to vector<16x8xbf16>
    %28 = vector.extract_strided_slice %25 {offsets = [0, 0], sizes = [16, 8], strides = [1, 1]} : vector<16x32xbf16> to vector<16x8xbf16>
    %cst_17 = arith.constant dense<0.000000e+00> : vector<16x16xf32>
    %29 = tpu.matmul %27, %28, %cst_17 {dimension_numbers = #tpu.dot_dimension_numbers<[1], [1], [0], [0], [0, 0, 1, 0], [], []>} : vector<16x8xbf16>, vector<16x8xbf16>, vector<16x16xf32> -> vector<16x16xf32>
    %30 = arith.addf %29, %23 : vector<16x16xf32>
    %cst_18 = arith.constant dense<0xFF800000> : vector<16xf32>
    %31 = vector.multi_reduction <maximumf>, %30, %cst_18 [1] : vector<16x16xf32> to vector<16xf32>
    %32 = vector.shape_cast %31 : vector<16xf32> to vector<16x1xf32>
    %33 = vector.broadcast %32 : vector<16x1xf32> to vector<16x16xf32>
    %34 = arith.subf %30, %33 : vector<16x16xf32>
    %35 = math.exp %34 : vector<16x16xf32>
    %cst_19 = arith.constant dense<0.000000e+00> : vector<16xf32>
    %36 = vector.multi_reduction <add>, %35, %cst_19 [1] : vector<16x16xf32> to vector<16xf32>
    %37 = vector.shape_cast %36 : vector<16xf32> to vector<16x1xf32>
    %38 = arith.truncf %35 : vector<16x16xf32> to vector<16x16xbf16>
    %39 = vector.extract_strided_slice %26 {offsets = [0, 0], sizes = [16, 8], strides = [1, 1]} : vector<16x32xbf16> to vector<16x8xbf16>
    %cst_20 = arith.constant dense<0.000000e+00> : vector<16x8xf32>
    %40 = tpu.matmul %38, %39, %cst_20 {dimension_numbers = #tpu.dot_dimension_numbers<[1], [0], [0], [1], [0, 0, 1, 1], [], []>} : vector<16x16xbf16>, vector<16x8xbf16>, vector<16x8xf32> -> vector<16x8xf32>
    %41 = tpu.reciprocal %37 {approx = true} : vector<16x1xf32> -> vector<16x1xf32>
    %42 = vector.broadcast %41 : vector<16x1xf32> to vector<16x8xf32>
    %43 = arith.mulf %40, %42 : vector<16x8xf32>
    %c0_21 = arith.constant 0 : index
    %c0_22 = arith.constant 0 : index
    %44 = vector.load %arg19[%c0_21, %c0_22] : memref<32x32xf32, #tpu.memory_space<vmem>>, vector<16x8xf32>
    tpu.vector_store %arg19[%c0_21, %c0_22], %43 {strides = array<i32>} : memref<32x32xf32, #tpu.memory_space<vmem>>, vector<16x8xf32>,
    %45 = vector.extract_strided_slice %24 {offsets = [0, 8], sizes = [16, 8], strides = [1, 1]} : vector<16x32xbf16> to vector<16x8xbf16>
    %46 = vector.extract_strided_slice %25 {offsets = [0, 8], sizes = [16, 8], strides = [1, 1]} : vector<16x32xbf16> to vector<16x8xbf16>
    %cst_23 = arith.constant dense<0.000000e+00> : vector<16x16xf32>
    %47 = tpu.matmul %45, %46, %cst_23 {dimension_numbers = #tpu.dot_dimension_numbers<[1], [1], [0], [0], [0, 0, 1, 0], [], []>} : vector<16x8xbf16>, vector<16x8xbf16>, vector<16x16xf32> -> vector<16x16xf32>
    %48 = arith.addf %47, %23 : vector<16x16xf32>
    %cst_24 = arith.constant dense<0xFF800000> : vector<16xf32>
    %49 = vector.multi_reduction <maximumf>, %48, %cst_24 [1] : vector<16x16xf32> to vector<16xf32>
    %50 = vector.shape_cast %49 : vector<16xf32> to vector<16x1xf32>
    %51 = vector.broadcast %50 : vector<16x1xf32> to vector<16x16xf32>
    %52 = arith.subf %48, %51 : vector<16x16xf32>
    %53 = math.exp %52 : vector<16x16xf32>
    %cst_25 = arith.constant dense<0.000000e+00> : vector<16xf32>
    %54 = vector.multi_reduction <add>, %53, %cst_25 [1] : vector<16x16xf32> to vector<16xf32>
    %55 = vector.shape_cast %54 : vector<16xf32> to vector<16x1xf32>
    %56 = arith.truncf %53 : vector<16x16xf32> to vector<16x16xbf16>
    %57 = vector.extract_strided_slice %26 {offsets = [0, 8], sizes = [16, 8], strides = [1, 1]} : vector<16x32xbf16> to vector<16x8xbf16>
    %cst_26 = arith.constant dense<0.000000e+00> : vector<16x8xf32>
    %58 = tpu.matmul %56, %57, %cst_26 {dimension_numbers = #tpu.dot_dimension_numbers<[1], [0], [0], [1], [0, 0, 1, 1], [], []>} : vector<16x16xbf16>, vector<16x8xbf16>, vector<16x8xf32> -> vector<16x8xf32>
    %59 = tpu.reciprocal %55 {approx = true} : vector<16x1xf32> -> vector<16x1xf32>
    %60 = vector.broadcast %59 : vector<16x1xf32> to vector<16x8xf32>
    %61 = arith.mulf %58, %60 : vector<16x8xf32>
    %c0_27 = arith.constant 0 : index
    %c8 = arith.constant 8 : index
    %62 = vector.load %arg19[%c0_27, %c8] : memref<32x32xf32, #tpu.memory_space<vmem>>, vector<16x8xf32>
    tpu.vector_store %arg19[%c0_27, %c8], %61 {strides = array<i32>} : memref<32x32xf32, #tpu.memory_space<vmem>>, vector<16x8xf32>,
    %63 = vector.extract_strided_slice %24 {offsets = [0, 16], sizes = [16, 8], strides = [1, 1]} : vector<16x32xbf16> to vector<16x8xbf16>
    %64 = vector.extract_strided_slice %25 {offsets = [0, 16], sizes = [16, 8], strides = [1, 1]} : vector<16x32xbf16> to vector<16x8xbf16>
    %cst_28 = arith.constant dense<0.000000e+00> : vector<16x16xf32>
    %65 = tpu.matmul %63, %64, %cst_28 {dimension_numbers = #tpu.dot_dimension_numbers<[1], [1], [0], [0], [0, 0, 1, 0], [], []>} : vector<16x8xbf16>, vector<16x8xbf16>, vector<16x16xf32> -> vector<16x16xf32>
    %66 = arith.addf %65, %23 : vector<16x16xf32>
    %cst_29 = arith.constant dense<0xFF800000> : vector<16xf32>
    %67 = vector.multi_reduction <maximumf>, %66, %cst_29 [1] : vector<16x16xf32> to vector<16xf32>
    %68 = vector.shape_cast %67 : vector<16xf32> to vector<16x1xf32>
    %69 = vector.broadcast %68 : vector<16x1xf32> to vector<16x16xf32>
    %70 = arith.subf %66, %69 : vector<16x16xf32>
    %71 = math.exp %70 : vector<16x16xf32>
    %cst_30 = arith.constant dense<0.000000e+00> : vector<16xf32>
    %72 = vector.multi_reduction <add>, %71, %cst_30 [1] : vector<16x16xf32> to vector<16xf32>
    %73 = vector.shape_cast %72 : vector<16xf32> to vector<16x1xf32>
    %74 = arith.truncf %71 : vector<16x16xf32> to vector<16x16xbf16>
    %75 = vector.extract_strided_slice %26 {offsets = [0, 16], sizes = [16, 8], strides = [1, 1]} : vector<16x32xbf16> to vector<16x8xbf16>
    %cst_31 = arith.constant dense<0.000000e+00> : vector<16x8xf32>
    %76 = tpu.matmul %74, %75, %cst_31 {dimension_numbers = #tpu.dot_dimension_numbers<[1], [0], [0], [1], [0, 0, 1, 1], [], []>} : vector<16x16xbf16>, vector<16x8xbf16>, vector<16x8xf32> -> vector<16x8xf32>
    %77 = tpu.reciprocal %73 {approx = true} : vector<16x1xf32> -> vector<16x1xf32>
    %78 = vector.broadcast %77 : vector<16x1xf32> to vector<16x8xf32>
    %79 = arith.mulf %76, %78 : vector<16x8xf32>
    %c0_32 = arith.constant 0 : index
    %c16 = arith.constant 16 : index
    %80 = vector.load %arg19[%c0_32, %c16] : memref<32x32xf32, #tpu.memory_space<vmem>>, vector<16x8xf32>
    tpu.vector_store %arg19[%c0_32, %c16], %79 {strides = array<i32>} : memref<32x32xf32, #tpu.memory_space<vmem>>, vector<16x8xf32>,
    %81 = vector.extract_strided_slice %24 {offsets = [0, 24], sizes = [16, 8], strides = [1, 1]} : vector<16x32xbf16> to vector<16x8xbf16>
    %82 = vector.extract_strided_slice %25 {offsets = [0, 24], sizes = [16, 8], strides = [1, 1]} : vector<16x32xbf16> to vector<16x8xbf16>
    %cst_33 = arith.constant dense<0.000000e+00> : vector<16x16xf32>
    %83 = tpu.matmul %81, %82, %cst_33 {dimension_numbers = #tpu.dot_dimension_numbers<[1], [1], [0], [0], [0, 0, 1, 0], [], []>} : vector<16x8xbf16>, vector<16x8xbf16>, vector<16x16xf32> -> vector<16x16xf32>
    %84 = arith.addf %83, %23 : vector<16x16xf32>
    %cst_34 = arith.constant dense<0xFF800000> : vector<16xf32>
    %85 = vector.multi_reduction <maximumf>, %84, %cst_34 [1] : vector<16x16xf32> to vector<16xf32>
    %86 = vector.shape_cast %85 : vector<16xf32> to vector<16x1xf32>
    %87 = vector.broadcast %86 : vector<16x1xf32> to vector<16x16xf32>
    %88 = arith.subf %84, %87 : vector<16x16xf32>
    %89 = math.exp %88 : vector<16x16xf32>
    %cst_35 = arith.constant dense<0.000000e+00> : vector<16xf32>
    %90 = vector.multi_reduction <add>, %89, %cst_35 [1] : vector<16x16xf32> to vector<16xf32>
    %91 = vector.shape_cast %90 : vector<16xf32> to vector<16x1xf32>
    %92 = arith.truncf %89 : vector<16x16xf32> to vector<16x16xbf16>
    %93 = vector.extract_strided_slice %26 {offsets = [0, 24], sizes = [16, 8], strides = [1, 1]} : vector<16x32xbf16> to vector<16x8xbf16>
    %cst_36 = arith.constant dense<0.000000e+00> : vector<16x8xf32>
    %94 = tpu.matmul %92, %93, %cst_36 {dimension_numbers = #tpu.dot_dimension_numbers<[1], [0], [0], [1], [0, 0, 1, 1], [], []>} : vector<16x16xbf16>, vector<16x8xbf16>, vector<16x8xf32> -> vector<16x8xf32>
    %95 = tpu.reciprocal %91 {approx = true} : vector<16x1xf32> -> vector<16x1xf32>
    %96 = vector.broadcast %95 : vector<16x1xf32> to vector<16x8xf32>
    %97 = arith.mulf %94, %96 : vector<16x8xf32>
    %c0_37 = arith.constant 0 : index
    %c24 = arith.constant 24 : index
    %98 = vector.load %arg19[%c0_37, %c24] : memref<32x32xf32, #tpu.memory_space<vmem>>, vector<16x8xf32>
    tpu.vector_store %arg19[%c0_37, %c24], %97 {strides = array<i32>} : memref<32x32xf32, #tpu.memory_space<vmem>>, vector<16x8xf32>,
    %99 = vector.extract_strided_slice %19 {offsets = [1, 0, 0], sizes = [1, 1, 16], strides = [1, 1, 1]} : vector<2x1x16xf32> to vector<1x1x16xf32>
    %100 = vector.shape_cast %99 : vector<1x1x16xf32> to vector<1x16xf32>
    %101 = vector.shape_cast %100 : vector<1x16xf32> to vector<1x16xf32>
    %102 = vector.broadcast %101 : vector<1x16xf32> to vector<16x16xf32>
    %103 = vector.extract_strided_slice %17 {offsets = [16, 0], sizes = [16, 32], strides = [1, 1]} : vector<32x64xbf16> to vector<16x32xbf16>
    %104 = vector.extract_strided_slice %17 {offsets = [16, 32], sizes = [16, 32], strides = [1, 1]} : vector<32x64xbf16> to vector<16x32xbf16>
    %105 = vector.extract_strided_slice %18 {offsets = [16, 0], sizes = [16, 32], strides = [1, 1]} : vector<32x32xbf16> to vector<16x32xbf16>
    %106 = vector.extract_strided_slice %103 {offsets = [0, 0], sizes = [16, 8], strides = [1, 1]} : vector<16x32xbf16> to vector<16x8xbf16>
    %107 = vector.extract_strided_slice %104 {offsets = [0, 0], sizes = [16, 8], strides = [1, 1]} : vector<16x32xbf16> to vector<16x8xbf16>
    %cst_38 = arith.constant dense<0.000000e+00> : vector<16x16xf32>
    %108 = tpu.matmul %106, %107, %cst_38 {dimension_numbers = #tpu.dot_dimension_numbers<[1], [1], [0], [0], [0, 0, 1, 0], [], []>} : vector<16x8xbf16>, vector<16x8xbf16>, vector<16x16xf32> -> vector<16x16xf32>
    %109 = arith.addf %108, %102 : vector<16x16xf32>
    %cst_39 = arith.constant dense<0xFF800000> : vector<16xf32>
    %110 = vector.multi_reduction <maximumf>, %109, %cst_39 [1] : vector<16x16xf32> to vector<16xf32>
    %111 = vector.shape_cast %110 : vector<16xf32> to vector<16x1xf32>
    %112 = vector.broadcast %111 : vector<16x1xf32> to vector<16x16xf32>
    %113 = arith.subf %109, %112 : vector<16x16xf32>
    %114 = math.exp %113 : vector<16x16xf32>
    %cst_40 = arith.constant dense<0.000000e+00> : vector<16xf32>
    %115 = vector.multi_reduction <add>, %114, %cst_40 [1] : vector<16x16xf32> to vector<16xf32>
    %116 = vector.shape_cast %115 : vector<16xf32> to vector<16x1xf32>
    %117 = arith.truncf %114 : vector<16x16xf32> to vector<16x16xbf16>
    %118 = vector.extract_strided_slice %105 {offsets = [0, 0], sizes = [16, 8], strides = [1, 1]} : vector<16x32xbf16> to vector<16x8xbf16>
    %cst_41 = arith.constant dense<0.000000e+00> : vector<16x8xf32>
    %119 = tpu.matmul %117, %118, %cst_41 {dimension_numbers = #tpu.dot_dimension_numbers<[1], [0], [0], [1], [0, 0, 1, 1], [], []>} : vector<16x16xbf16>, vector<16x8xbf16>, vector<16x8xf32> -> vector<16x8xf32>
    %120 = tpu.reciprocal %116 {approx = true} : vector<16x1xf32> -> vector<16x1xf32>
    %121 = vector.broadcast %120 : vector<16x1xf32> to vector<16x8xf32>
    %122 = arith.mulf %119, %121 : vector<16x8xf32>
    %c16_42 = arith.constant 16 : index
    %c0_43 = arith.constant 0 : index
    %123 = vector.load %arg19[%c16_42, %c0_43] : memref<32x32xf32, #tpu.memory_space<vmem>>, vector<16x8xf32>
    tpu.vector_store %arg19[%c16_42, %c0_43], %122 {strides = array<i32>} : memref<32x32xf32, #tpu.memory_space<vmem>>, vector<16x8xf32>,
    %124 = vector.extract_strided_slice %103 {offsets = [0, 8], sizes = [16, 8], strides = [1, 1]} : vector<16x32xbf16> to vector<16x8xbf16>
    %125 = vector.extract_strided_slice %104 {offsets = [0, 8], sizes = [16, 8], strides = [1, 1]} : vector<16x32xbf16> to vector<16x8xbf16>
    %cst_44 = arith.constant dense<0.000000e+00> : vector<16x16xf32>
    %126 = tpu.matmul %124, %125, %cst_44 {dimension_numbers = #tpu.dot_dimension_numbers<[1], [1], [0], [0], [0, 0, 1, 0], [], []>} : vector<16x8xbf16>, vector<16x8xbf16>, vector<16x16xf32> -> vector<16x16xf32>
    %127 = arith.addf %126, %102 : vector<16x16xf32>
    %cst_45 = arith.constant dense<0xFF800000> : vector<16xf32>
    %128 = vector.multi_reduction <maximumf>, %127, %cst_45 [1] : vector<16x16xf32> to vector<16xf32>
    %129 = vector.shape_cast %128 : vector<16xf32> to vector<16x1xf32>
    %130 = vector.broadcast %129 : vector<16x1xf32> to vector<16x16xf32>
    %131 = arith.subf %127, %130 : vector<16x16xf32>
    %132 = math.exp %131 : vector<16x16xf32>
    %cst_46 = arith.constant dense<0.000000e+00> : vector<16xf32>
    %133 = vector.multi_reduction <add>, %132, %cst_46 [1] : vector<16x16xf32> to vector<16xf32>
    %134 = vector.shape_cast %133 : vector<16xf32> to vector<16x1xf32>
    %135 = arith.truncf %132 : vector<16x16xf32> to vector<16x16xbf16>
    %136 = vector.extract_strided_slice %105 {offsets = [0, 8], sizes = [16, 8], strides = [1, 1]} : vector<16x32xbf16> to vector<16x8xbf16>
    %cst_47 = arith.constant dense<0.000000e+00> : vector<16x8xf32>
    %137 = tpu.matmul %135, %136, %cst_47 {dimension_numbers = #tpu.dot_dimension_numbers<[1], [0], [0], [1], [0, 0, 1, 1], [], []>} : vector<16x16xbf16>, vector<16x8xbf16>, vector<16x8xf32> -> vector<16x8xf32>
    %138 = tpu.reciprocal %134 {approx = true} : vector<16x1xf32> -> vector<16x1xf32>
    %139 = vector.broadcast %138 : vector<16x1xf32> to vector<16x8xf32>
    %140 = arith.mulf %137, %139 : vector<16x8xf32>
    %c16_48 = arith.constant 16 : index
    %c8_49 = arith.constant 8 : index
    %141 = vector.load %arg19[%c16_48, %c8_49] : memref<32x32xf32, #tpu.memory_space<vmem>>, vector<16x8xf32>
    tpu.vector_store %arg19[%c16_48, %c8_49], %140 {strides = array<i32>} : memref<32x32xf32, #tpu.memory_space<vmem>>, vector<16x8xf32>,
    %142 = vector.extract_strided_slice %103 {offsets = [0, 16], sizes = [16, 8], strides = [1, 1]} : vector<16x32xbf16> to vector<16x8xbf16>
    %143 = vector.extract_strided_slice %104 {offsets = [0, 16], sizes = [16, 8], strides = [1, 1]} : vector<16x32xbf16> to vector<16x8xbf16>
    %cst_50 = arith.constant dense<0.000000e+00> : vector<16x16xf32>
    %144 = tpu.matmul %142, %143, %cst_50 {dimension_numbers = #tpu.dot_dimension_numbers<[1], [1], [0], [0], [0, 0, 1, 0], [], []>} : vector<16x8xbf16>, vector<16x8xbf16>, vector<16x16xf32> -> vector<16x16xf32>
    %145 = arith.addf %144, %102 : vector<16x16xf32>
    %cst_51 = arith.constant dense<0xFF800000> : vector<16xf32>
    %146 = vector.multi_reduction <maximumf>, %145, %cst_51 [1] : vector<16x16xf32> to vector<16xf32>
    %147 = vector.shape_cast %146 : vector<16xf32> to vector<16x1xf32>
    %148 = vector.broadcast %147 : vector<16x1xf32> to vector<16x16xf32>
    %149 = arith.subf %145, %148 : vector<16x16xf32>
    %150 = math.exp %149 : vector<16x16xf32>
    %cst_52 = arith.constant dense<0.000000e+00> : vector<16xf32>
    %151 = vector.multi_reduction <add>, %150, %cst_52 [1] : vector<16x16xf32> to vector<16xf32>
    %152 = vector.shape_cast %151 : vector<16xf32> to vector<16x1xf32>
    %153 = arith.truncf %150 : vector<16x16xf32> to vector<16x16xbf16>
    %154 = vector.extract_strided_slice %105 {offsets = [0, 16], sizes = [16, 8], strides = [1, 1]} : vector<16x32xbf16> to vector<16x8xbf16>
    %cst_53 = arith.constant dense<0.000000e+00> : vector<16x8xf32>
    %155 = tpu.matmul %153, %154, %cst_53 {dimension_numbers = #tpu.dot_dimension_numbers<[1], [0], [0], [1], [0, 0, 1, 1], [], []>} : vector<16x16xbf16>, vector<16x8xbf16>, vector<16x8xf32> -> vector<16x8xf32>
    %156 = tpu.reciprocal %152 {approx = true} : vector<16x1xf32> -> vector<16x1xf32>
    %157 = vector.broadcast %156 : vector<16x1xf32> to vector<16x8xf32>
    %158 = arith.mulf %155, %157 : vector<16x8xf32>
    %c16_54 = arith.constant 16 : index
    %c16_55 = arith.constant 16 : index
    %159 = vector.load %arg19[%c16_54, %c16_55] : memref<32x32xf32, #tpu.memory_space<vmem>>, vector<16x8xf32>
    tpu.vector_store %arg19[%c16_54, %c16_55], %158 {strides = array<i32>} : memref<32x32xf32, #tpu.memory_space<vmem>>, vector<16x8xf32>,
    %160 = vector.extract_strided_slice %103 {offsets = [0, 24], sizes = [16, 8], strides = [1, 1]} : vector<16x32xbf16> to vector<16x8xbf16>
    %161 = vector.extract_strided_slice %104 {offsets = [0, 24], sizes = [16, 8], strides = [1, 1]} : vector<16x32xbf16> to vector<16x8xbf16>
    %cst_56 = arith.constant dense<0.000000e+00> : vector<16x16xf32>
    %162 = tpu.matmul %160, %161, %cst_56 {dimension_numbers = #tpu.dot_dimension_numbers<[1], [1], [0], [0], [0, 0, 1, 0], [], []>} : vector<16x8xbf16>, vector<16x8xbf16>, vector<16x16xf32> -> vector<16x16xf32>
    %163 = arith.addf %162, %102 : vector<16x16xf32>
    %cst_57 = arith.constant dense<0xFF800000> : vector<16xf32>
    %164 = vector.multi_reduction <maximumf>, %163, %cst_57 [1] : vector<16x16xf32> to vector<16xf32>
    %165 = vector.shape_cast %164 : vector<16xf32> to vector<16x1xf32>
    %166 = vector.broadcast %165 : vector<16x1xf32> to vector<16x16xf32>
    %167 = arith.subf %163, %166 : vector<16x16xf32>
    %168 = math.exp %167 : vector<16x16xf32>
    %cst_58 = arith.constant dense<0.000000e+00> : vector<16xf32>
    %169 = vector.multi_reduction <add>, %168, %cst_58 [1] : vector<16x16xf32> to vector<16xf32>
    %170 = vector.shape_cast %169 : vector<16xf32> to vector<16x1xf32>
    %171 = arith.truncf %168 : vector<16x16xf32> to vector<16x16xbf16>
    %172 = vector.extract_strided_slice %105 {offsets = [0, 24], sizes = [16, 8], strides = [1, 1]} : vector<16x32xbf16> to vector<16x8xbf16>
    %cst_59 = arith.constant dense<0.000000e+00> : vector<16x8xf32>
    %173 = tpu.matmul %171, %172, %cst_59 {dimension_numbers = #tpu.dot_dimension_numbers<[1], [0], [0], [1], [0, 0, 1, 1], [], []>} : vector<16x16xbf16>, vector<16x8xbf16>, vector<16x8xf32> -> vector<16x8xf32>
    %174 = tpu.reciprocal %170 {approx = true} : vector<16x1xf32> -> vector<16x1xf32>
    %175 = vector.broadcast %174 : vector<16x1xf32> to vector<16x8xf32>
    %176 = arith.mulf %173, %175 : vector<16x8xf32>
    %c16_60 = arith.constant 16 : index
    %c24_61 = arith.constant 24 : index
    %177 = vector.load %arg19[%c16_60, %c24_61] : memref<32x32xf32, #tpu.memory_space<vmem>>, vector<16x8xf32>
    tpu.vector_store %arg19[%c16_60, %c24_61], %176 {strides = array<i32>} : memref<32x32xf32, #tpu.memory_space<vmem>>, vector<16x8xf32>,
    %c0_62 = arith.constant 0 : index
    %c0_63 = arith.constant 0 : index
    %178 = vector.load %arg19[%c0_62, %c0_63] : memref<32x32xf32, #tpu.memory_space<vmem>>, vector<32x32xf32>
    %179 = arith.truncf %178 : vector<32x32xf32> to vector<32x32xbf16>
    %c0_64 = arith.constant 0 : index
    %c0_65 = arith.constant 0 : index
    %180 = vector.load %arg8[%c0_64, %c0_65] : memref<32x32xbf16, #tpu.memory_space<vmem>>, vector<32x32xbf16>
    %cst_66 = arith.constant dense<0.000000e+00> : vector<32x32xf32>
    %181 = tpu.matmul %179, %180, %cst_66 {dimension_numbers = #tpu.dot_dimension_numbers<[1], [0], [0], [1], [0, 0, 1, 1], [], []>} : vector<32x32xbf16>, vector<32x32xbf16>, vector<32x32xf32> -> vector<32x32xf32>
    %c0_67 = arith.constant 0 : index
    %c0_68 = arith.constant 0 : index
    %182 = vector.load %arg9[%c0_67, %c0_68] : memref<1x32xf32, #tpu.memory_space<vmem>>, vector<1x32xf32>
    %183 = vector.broadcast %182 : vector<1x32xf32> to vector<32x32xf32>
    %184 = arith.addf %181, %183 : vector<32x32xf32>
    %185 = arith.addf %1, %184 : vector<32x32xf32>
    %c0_69 = arith.constant 0 : index
    %c0_70 = arith.constant 0 : index
    %186 = vector.load %arg10[%c0_69, %c0_70] : memref<1x32xf32, #tpu.memory_space<vmem>>, vector<1x32xf32>
    %c0_71 = arith.constant 0 : index
    %c0_72 = arith.constant 0 : index
    %187 = vector.load %arg11[%c0_71, %c0_72] : memref<1x32xf32, #tpu.memory_space<vmem>>, vector<1x32xf32>
    %cst_73 = arith.constant dense<0.000000e+00> : vector<32xf32>
    %188 = vector.multi_reduction <add>, %185, %cst_73 [1] : vector<32x32xf32> to vector<32xf32>
    %189 = vector.shape_cast %188 : vector<32xf32> to vector<32x1xf32>
    %cst_74 = arith.constant 3.200000e+01 : f32
    %190 = vector.broadcast %cst_74 : f32 to vector<32x1xf32>
    %191 = arith.divf %189, %190 : vector<32x1xf32>
    %192 = vector.broadcast %191 : vector<32x1xf32> to vector<32x32xf32>
    %193 = arith.subf %185, %192 : vector<32x32xf32>
    %194 = arith.mulf %193, %193 : vector<32x32xf32>
    %cst_75 = arith.constant dense<0.000000e+00> : vector<32xf32>
    %195 = vector.multi_reduction <add>, %194, %cst_75 [1] : vector<32x32xf32> to vector<32xf32>
    %196 = vector.shape_cast %195 : vector<32xf32> to vector<32x1xf32>
    %cst_76 = arith.constant 3.200000e+01 : f32
    %197 = vector.broadcast %cst_76 : f32 to vector<32x1xf32>
    %198 = arith.divf %196, %197 : vector<32x1xf32>
    %cst_77 = arith.constant 9.99999974E-6 : f32
    %199 = vector.broadcast %cst_77 : f32 to vector<32x1xf32>
    %200 = arith.addf %198, %199 : vector<32x1xf32>
    %201 = math.rsqrt %200 : vector<32x1xf32>
    %202 = vector.broadcast %201 : vector<32x1xf32> to vector<32x32xf32>
    %203 = arith.mulf %193, %202 : vector<32x32xf32>
    %204 = vector.broadcast %186 : vector<1x32xf32> to vector<32x32xf32>
    %205 = arith.mulf %203, %204 : vector<32x32xf32>
    %206 = vector.broadcast %187 : vector<1x32xf32> to vector<32x32xf32>
    %207 = arith.addf %205, %206 : vector<32x32xf32>
    %208 = arith.truncf %207 : vector<32x32xf32> to vector<32x32xbf16>
    %c0_78 = arith.constant 0 : index
    %c0_79 = arith.constant 0 : index
    %209 = vector.load %arg12[%c0_78, %c0_79] : memref<32x64xbf16, #tpu.memory_space<vmem>>, vector<32x64xbf16>
    %cst_80 = arith.constant dense<0.000000e+00> : vector<32x64xf32>
    %210 = tpu.matmul %208, %209, %cst_80 {dimension_numbers = #tpu.dot_dimension_numbers<[1], [0], [0], [1], [0, 0, 1, 1], [], []>} : vector<32x32xbf16>, vector<32x64xbf16>, vector<32x64xf32> -> vector<32x64xf32>
    %c0_81 = arith.constant 0 : index
    %c0_82 = arith.constant 0 : index
    %211 = vector.load %arg13[%c0_81, %c0_82] : memref<1x64xf32, #tpu.memory_space<vmem>>, vector<1x64xf32>
    %212 = vector.broadcast %211 : vector<1x64xf32> to vector<32x64xf32>
    %213 = arith.addf %210, %212 : vector<32x64xf32>
    %cst_83 = arith.constant 0.000000e+00 : f32
    %214 = vector.broadcast %cst_83 : f32 to vector<32x64xf32>
    %215 = arith.maximumf %213, %214 : vector<32x64xf32>
    %216 = arith.truncf %215 : vector<32x64xf32> to vector<32x64xbf16>
    %c0_84 = arith.constant 0 : index
    %c0_85 = arith.constant 0 : index
    %217 = vector.load %arg14[%c0_84, %c0_85] : memref<64x32xbf16, #tpu.memory_space<vmem>>, vector<64x32xbf16>
    %cst_86 = arith.constant dense<0.000000e+00> : vector<32x32xf32>
    %218 = tpu.matmul %216, %217, %cst_86 {dimension_numbers = #tpu.dot_dimension_numbers<[1], [0], [0], [1], [0, 0, 1, 1], [], []>} : vector<32x64xbf16>, vector<64x32xbf16>, vector<32x32xf32> -> vector<32x32xf32>
    %c0_87 = arith.constant 0 : index
    %c0_88 = arith.constant 0 : index
    %219 = vector.load %arg15[%c0_87, %c0_88] : memref<1x32xf32, #tpu.memory_space<vmem>>, vector<1x32xf32>
    %220 = vector.broadcast %219 : vector<1x32xf32> to vector<32x32xf32>
    %221 = arith.addf %218, %220 : vector<32x32xf32>
    %222 = arith.addf %207, %221 : vector<32x32xf32>
    %c0_89 = arith.constant 0 : index
    %c0_90 = arith.constant 0 : index
    %223 = vector.load %arg16[%c0_89, %c0_90] : memref<1x32xf32, #tpu.memory_space<vmem>>, vector<1x32xf32>
    %c0_91 = arith.constant 0 : index
    %c0_92 = arith.constant 0 : index
    %224 = vector.load %arg17[%c0_91, %c0_92] : memref<1x32xf32, #tpu.memory_space<vmem>>, vector<1x32xf32>
    %cst_93 = arith.constant dense<0.000000e+00> : vector<32xf32>
    %225 = vector.multi_reduction <add>, %222, %cst_93 [1] : vector<32x32xf32> to vector<32xf32>
    %226 = vector.shape_cast %225 : vector<32xf32> to vector<32x1xf32>
    %cst_94 = arith.constant 3.200000e+01 : f32
    %227 = vector.broadcast %cst_94 : f32 to vector<32x1xf32>
    %228 = arith.divf %226, %227 : vector<32x1xf32>
    %229 = vector.broadcast %228 : vector<32x1xf32> to vector<32x32xf32>
    %230 = arith.subf %222, %229 : vector<32x32xf32>
    %231 = arith.mulf %230, %230 : vector<32x32xf32>
    %cst_95 = arith.constant dense<0.000000e+00> : vector<32xf32>
    %232 = vector.multi_reduction <add>, %231, %cst_95 [1] : vector<32x32xf32> to vector<32xf32>
    %233 = vector.shape_cast %232 : vector<32xf32> to vector<32x1xf32>
    %cst_96 = arith.constant 3.200000e+01 : f32
    %234 = vector.broadcast %cst_96 : f32 to vector<32x1xf32>
    %235 = arith.divf %233, %234 : vector<32x1xf32>
    %cst_97 = arith.constant 9.99999974E-6 : f32
    %236 = vector.broadcast %cst_97 : f32 to vector<32x1xf32>
    %237 = arith.addf %235, %236 : vector<32x1xf32>
    %238 = math.rsqrt %237 : vector<32x1xf32>
    %239 = vector.broadcast %238 : vector<32x1xf32> to vector<32x32xf32>
    %240 = arith.mulf %230, %239 : vector<32x32xf32>
    %241 = vector.broadcast %223 : vector<1x32xf32> to vector<32x32xf32>
    %242 = arith.mulf %240, %241 : vector<32x32xf32>
    %243 = vector.broadcast %224 : vector<1x32xf32> to vector<32x32xf32>
    %244 = arith.addf %242, %243 : vector<32x32xf32>
    %245 = vector.shape_cast %244 : vector<32x32xf32> to vector<2x16x32xf32>
    %c0_98 = arith.constant 0 : index
    %c0_99 = arith.constant 0 : index
    %c0_100 = arith.constant 0 : index
    %246 = vector.load %arg18[%c0_98, %c0_99, %c0_100] : memref<2x16x32xf32, #tpu.memory_space<vmem>>, vector<2x16x32xf32>
    tpu.vector_store %arg18[%c0_98, %c0_99, %c0_100], %245 {strides = array<i32>} : memref<2x16x32xf32, #tpu.memory_space<vmem>>, vector<2x16x32xf32>,
    return
  }
  func.func @transform_0(%arg0: i32) -> (i32, i32, i32) {
    %c0_i32 = arith.constant 0 : i32
    %c0_i32_0 = arith.constant 0 : i32
    %c0_i32_1 = arith.constant 0 : i32
    return %arg0, %c0_i32, %c0_i32_0 : i32, i32, i32
  }
  func.func @transform_1(%arg0: i32) -> (i32, i32, i32) {
    %c0_i32 = arith.constant 0 : i32
    %c0_i32_0 = arith.constant 0 : i32
    %c0_i32_1 = arith.constant 0 : i32
    return %arg0, %c0_i32, %c0_i32_0 : i32, i32, i32
  }
  func.func @transform_2(%arg0: i32) -> (i32, i32, i32) {
    %c0_i32 = arith.constant 0 : i32
    %c0_i32_0 = arith.constant 0 : i32
    %c0_i32_1 = arith.constant 0 : i32
    return %arg0, %c0_i32, %c0_i32_0 : i32, i32, i32
  }
  func.func @transform_3(%arg0: i32) -> (i32, i32) {
    %c0_i32 = arith.constant 0 : i32
    %c0_i32_0 = arith.constant 0 : i32
    %c0_i32_1 = arith.constant 0 : i32
    return %c0_i32, %c0_i32_0 : i32, i32
  }
  func.func @transform_4(%arg0: i32) -> (i32, i32) {
    %c0_i32 = arith.constant 0 : i32
    %c0_i32_0 = arith.constant 0 : i32
    %c0_i32_1 = arith.constant 0 : i32
    return %c0_i32, %c0_i32_0 : i32, i32
  }
  func.func @transform_5(%arg0: i32) -> (i32, i32) {
    %c0_i32 = arith.constant 0 : i32
    %c0_i32_0 = arith.constant 0 : i32
    %c0_i32_1 = arith.constant 0 : i32
    return %c0_i32, %c0_i32_0 : i32, i32
  }
  func.func @transform_6(%arg0: i32) -> (i32, i32) {
    %c0_i32 = arith.constant 0 : i32
    %c0_i32_0 = arith.constant 0 : i32
    %c0_i32_1 = arith.constant 0 : i32
    return %c0_i32, %c0_i32_0 : i32, i32
  }
  func.func @transform_7(%arg0: i32) -> (i32, i32) {
    %c0_i32 = arith.constant 0 : i32
    %c0_i32_0 = arith.constant 0 : i32
    %c0_i32_1 = arith.constant 0 : i32
    return %c0_i32, %c0_i32_0 : i32, i32
  }
  func.func @transform_8(%arg0: i32) -> (i32, i32) {
    %c0_i32 = arith.constant 0 : i32
    %c0_i32_0 = arith.constant 0 : i32
    %c0_i32_1 = arith.constant 0 : i32
    return %c0_i32, %c0_i32_0 : i32, i32
  }
  func.func @transform_9(%arg0: i32) -> (i32, i32) {
    %c0_i32 = arith.constant 0 : i32
    %c0_i32_0 = arith.constant 0 : i32
    %c0_i32_1 = arith.constant 0 : i32
    return %c0_i32, %c0_i32_0 : i32, i32
  }
  func.func @transform_10(%arg0: i32) -> (i32, i32) {
    %c0_i32 = arith.constant 0 : i32
    %c0_i32_0 = arith.constant 0 : i32
    %c0_i32_1 = arith.constant 0 : i32
    return %c0_i32, %c0_i32_0 : i32, i32
  }
  func.func @transform_11(%arg0: i32) -> (i32, i32) {
    %c0_i32 = arith.constant 0 : i32
    %c0_i32_0 = arith.constant 0 : i32
    %c0_i32_1 = arith.constant 0 : i32
    return %c0_i32, %c0_i32_0 : i32, i32
  }
  func.func @transform_12(%arg0: i32) -> (i32, i32) {
    %c0_i32 = arith.constant 0 : i32
    %c0_i32_0 = arith.constant 0 : i32
    %c0_i32_1 = arith.constant 0 : i32
    return %c0_i32, %c0_i32_0 : i32, i32
  }
  func.func @transform_13(%arg0: i32) -> (i32, i32) {
    %c0_i32 = arith.constant 0 : i32
    %c0_i32_0 = arith.constant 0 : i32
    %c0_i32_1 = arith.constant 0 : i32
    return %c0_i32, %c0_i32_0 : i32, i32
  }
  func.func @transform_14(%arg0: i32) -> (i32, i32) {
    %c0_i32 = arith.constant 0 : i32
    %c0_i32_0 = arith.constant 0 : i32
    %c0_i32_1 = arith.constant 0 : i32
    return %c0_i32, %c0_i32_0 : i32, i32
  }
  func.func @transform_15(%arg0: i32) -> (i32, i32) {
    %c0_i32 = arith.constant 0 : i32
    %c0_i32_0 = arith.constant 0 : i32
    %c0_i32_1 = arith.constant 0 : i32
    return %c0_i32, %c0_i32_0 : i32, i32
  }
  func.func @transform_16(%arg0: i32) -> (i32, i32) {
    %c0_i32 = arith.constant 0 : i32
    %c0_i32_0 = arith.constant 0 : i32
    %c0_i32_1 = arith.constant 0 : i32
    return %c0_i32, %c0_i32_0 : i32, i32
  }
  func.func @transform_17(%arg0: i32) -> (i32, i32, i32) {
    %c0_i32 = arith.constant 0 : i32
    %c0_i32_0 = arith.constant 0 : i32
    %c0_i32_1 = arith.constant 0 : i32
    return %arg0, %c0_i32, %c0_i32_0 : i32, i32, i32
  }
}

</mosaic_0001>

<llo_original>
// kernel: transformer_encoder_layer.1
$region0: #{transformer_encoder_layer.1}
  #allocation0 [shape = 'u32[]', space=smem, size = 0x4, offset = 0x4, fixed_abs, tag = 'smem constant byte address 0x4 - core index']
  #allocation1 [shape = 'u32[144,128]{1,0:T(1,128)}', space=vmem, size = 0x12000, scoped, tag = 'internal scratch']
  #allocation2 [shape = 'f32[32,32]{1,0:T(8,128)}', space=vmem, size = 0x4000, scoped, tag = 'scratch operand']
  %s0 = inlined_call_operand.vmem [shape: f32[2,16,32], index: 0, kind: input, shape index: {}]
  %s1 = inlined_call_operand.vmem [shape: f32[2,16,32], index: 1, kind: input, shape index: {}]
  %s2 = inlined_call_operand.vmem [shape: f32[2,1,16], index: 2, kind: input, shape index: {}]
  %s3 = inlined_call_operand.vmem [shape: bf16[32,64], index: 3, kind: input, shape index: {}]
  %s4 = inlined_call_operand.vmem [shape: f32[1,64], index: 4, kind: input, shape index: {}]
  %s5 = inlined_call_operand.vmem [shape: bf16[32,32], index: 5, kind: input, shape index: {}]
  %s6 = inlined_call_operand.vmem [shape: f32[1,32], index: 6, kind: input, shape index: {}]
  %s7 = inlined_call_operand.vmem [shape: bf16[32,32], index: 7, kind: input, shape index: {}]
  %s8 = inlined_call_operand.vmem [shape: f32[1,32], index: 8, kind: input, shape index: {}]
  %s9 = inlined_call_operand.vmem [shape: f32[1,32], index: 9, kind: input, shape index: {}]
  %s10 = inlined_call_operand.vmem [shape: f32[1,32], index: 10, kind: input, shape index: {}]
  %s11 = inlined_call_operand.vmem [shape: bf16[32,64], index: 11, kind: input, shape index: {}]
  %s12 = inlined_call_operand.vmem [shape: f32[1,64], index: 12, kind: input, shape index: {}]
  %s13 = inlined_call_operand.vmem [shape: bf16[64,32], index: 13, kind: input, shape index: {}]
  %s14 = inlined_call_operand.vmem [shape: f32[1,32], index: 14, kind: input, shape index: {}]
  %s15 = inlined_call_operand.vmem [shape: f32[1,32], index: 15, kind: input, shape index: {}]
  %s16 = inlined_call_operand.vmem [shape: f32[1,32], index: 16, kind: input, shape index: {}]
  %s17 = inlined_call_operand.vmem [shape: f32[2,16,32], index: 17, kind: output, shape index: {}]
  %s18 = sld [smem:[#allocation0]]
  $region78: #{transformer_encoder_layer.1} parent=0
    _
  %s20 = ssub.s32 1, %s18
  %s21 = scalar_select 0, %s20, %s18
  // Predicated region
  $region2: #{transformer_encoder_layer.1} parent=0 // pred_check
    _
  $region3: #{transformer_encoder_layer.1} parent=0 // pred_check_branch
    %23 = sbr.rel (0) target = $region5
  $region4: #{transformer_encoder_layer.1} parent=0 // pred_region
    _
  $region5: #{transformer_encoder_layer.1} parent=0 // pred_fallthru
    _
  // Predicated region
  $region6: #{transformer_encoder_layer.1} parent=0 // pred_check
    _
  $region7: #{transformer_encoder_layer.1} parent=0 // pred_check_branch
    %25 = sbr.rel (0) target = $region9
  $region8: #{transformer_encoder_layer.1} parent=0 // pred_region
    _
  $region9: #{transformer_encoder_layer.1} parent=0 // pred_fallthru
    _
  // Predicated region
  $region10: #{transformer_encoder_layer.1} parent=0 // pred_check
    _
  $region11: #{transformer_encoder_layer.1} parent=0 // pred_check_branch
    %27 = sbr.rel (0) target = $region13
  $region12: #{transformer_encoder_layer.1} parent=0 // pred_region
    _
  $region13: #{transformer_encoder_layer.1} parent=0 // pred_fallthru
    _
  // Predicated region
  $region14: #{transformer_encoder_layer.1} parent=0 // pred_check
    _
  $region15: #{transformer_encoder_layer.1} parent=0 // pred_check_branch
    %29 = sbr.rel (0) target = $region17
  $region16: #{transformer_encoder_layer.1} parent=0 // pred_region
    _
  $region17: #{transformer_encoder_layer.1} parent=0 // pred_fallthru
    _
  // Predicated region
  $region18: #{transformer_encoder_layer.1} parent=0 // pred_check
    _
  $region19: #{transformer_encoder_layer.1} parent=0 // pred_check_branch
    %31 = sbr.rel (0) target = $region21
  $region20: #{transformer_encoder_layer.1} parent=0 // pred_region
    _
  $region21: #{transformer_encoder_layer.1} parent=0 // pred_fallthru
    _
  // Predicated region
  $region22: #{transformer_encoder_layer.1} parent=0 // pred_check
    _
  $region23: #{transformer_encoder_layer.1} parent=0 // pred_check_branch
    %33 = sbr.rel (0) target = $region25
  $region24: #{transformer_encoder_layer.1} parent=0 // pred_region
    _
  $region25: #{transformer_encoder_layer.1} parent=0 // pred_fallthru
    _
  // Predicated region
  $region26: #{transformer_encoder_layer.1} parent=0 // pred_check
    _
  $region27: #{transformer_encoder_layer.1} parent=0 // pred_check_branch
    %35 = sbr.rel (0) target = $region29
  $region28: #{transformer_encoder_layer.1} parent=0 // pred_region
    _
  $region29: #{transformer_encoder_layer.1} parent=0 // pred_fallthru
    _
  // Predicated region
  $region30: #{transformer_encoder_layer.1} parent=0 // pred_check
    _
  $region31: #{transformer_encoder_layer.1} parent=0 // pred_check_branch
    %37 = sbr.rel (0) target = $region33
  $region32: #{transformer_encoder_layer.1} parent=0 // pred_region
    _
  $region33: #{transformer_encoder_layer.1} parent=0 // pred_fallthru
    _
  // Predicated region
  $region34: #{transformer_encoder_layer.1} parent=0 // pred_check
    _
  $region35: #{transformer_encoder_layer.1} parent=0 // pred_check_branch
    %39 = sbr.rel (0) target = $region37
  $region36: #{transformer_encoder_layer.1} parent=0 // pred_region
    _
  $region37: #{transformer_encoder_layer.1} parent=0 // pred_fallthru
    _
  // Predicated region
  $region38: #{transformer_encoder_layer.1} parent=0 // pred_check
    _
  $region39: #{transformer_encoder_layer.1} parent=0 // pred_check_branch
    %41 = sbr.rel (0) target = $region41
  $region40: #{transformer_encoder_layer.1} parent=0 // pred_region
    _
  $region41: #{transformer_encoder_layer.1} parent=0 // pred_fallthru
    _
  // Predicated region
  $region42: #{transformer_encoder_layer.1} parent=0 // pred_check
    _
  $region43: #{transformer_encoder_layer.1} parent=0 // pred_check_branch
    %43 = sbr.rel (0) target = $region45
  $region44: #{transformer_encoder_layer.1} parent=0 // pred_region
    _
  $region45: #{transformer_encoder_layer.1} parent=0 // pred_fallthru
    _
  // Predicated region
  $region46: #{transformer_encoder_layer.1} parent=0 // pred_check
    _
  $region47: #{transformer_encoder_layer.1} parent=0 // pred_check_branch
    %45 = sbr.rel (0) target = $region49
  $region48: #{transformer_encoder_layer.1} parent=0 // pred_region
    _
  $region49: #{transformer_encoder_layer.1} parent=0 // pred_fallthru
    _
  // Predicated region
  $region50: #{transformer_encoder_layer.1} parent=0 // pred_check
    _
  $region51: #{transformer_encoder_layer.1} parent=0 // pred_check_branch
    %47 = sbr.rel (0) target = $region53
  $region52: #{transformer_encoder_layer.1} parent=0 // pred_region
    _
  $region53: #{transformer_encoder_layer.1} parent=0 // pred_fallthru
    _
  // Predicated region
  $region54: #{transformer_encoder_layer.1} parent=0 // pred_check
    _
  $region55: #{transformer_encoder_layer.1} parent=0 // pred_check_branch
    %49 = sbr.rel (0) target = $region57
  $region56: #{transformer_encoder_layer.1} parent=0 // pred_region
    _
  $region57: #{transformer_encoder_layer.1} parent=0 // pred_fallthru
    _
  // Predicated region
  $region58: #{transformer_encoder_layer.1} parent=0 // pred_check
    _
  $region59: #{transformer_encoder_layer.1} parent=0 // pred_check_branch
    %51 = sbr.rel (0) target = $region61
  $region60: #{transformer_encoder_layer.1} parent=0 // pred_region
    _
  $region61: #{transformer_encoder_layer.1} parent=0 // pred_fallthru
    _
  // Predicated region
  $region62: #{transformer_encoder_layer.1} parent=0 // pred_check
    _
  $region63: #{transformer_encoder_layer.1} parent=0 // pred_check_branch
    %53 = sbr.rel (0) target = $region65
  $region64: #{transformer_encoder_layer.1} parent=0 // pred_region
    _
  $region65: #{transformer_encoder_layer.1} parent=0 // pred_fallthru
    _
  // Predicated region
  $region66: #{transformer_encoder_layer.1} parent=0 // pred_check
    _
  $region67: #{transformer_encoder_layer.1} parent=0 // pred_check_branch
    %55 = sbr.rel (0) target = $region69
  $region68: #{transformer_encoder_layer.1} parent=0 // pred_region
    _
  $region69: #{transformer_encoder_layer.1} parent=0 // pred_fallthru
    _
  %v57 = vld [vmem:[%s0] sm:$0xff]
  %v58 = vld [vmem:[%s0 + $0x8] sm:$0xff]
  %v59 = vld [vmem:[%s0 + $0x10] sm:$0xff]
  %v60 = vld [vmem:[%s0 + $0x18] sm:$0xff]
  %v61 = vld [vmem:[%s1] sm:$0xff]
  %v62 = vld [vmem:[%s1 + $0x8] sm:$0xff]
  %v63 = vld [vmem:[%s1 + $0x10] sm:$0xff]
  %v64 = vld [vmem:[%s1 + $0x18] sm:$0xff]
  %v65 = vadd.f32 %v57, %v61
  %v66 = vadd.f32 %v58, %v62
  %v67 = vadd.f32 %v59, %v63
  %v68 = vadd.f32 %v60, %v64
  %v69 = vpack.c.bf16 %v66, %v65
  %v70 = vpack.c.bf16 %v68, %v67
  %v71 = vld [vmem:[%s3] sm:$0xf]
  %v72 = vld [vmem:[%s3 + $0x4] sm:$0xf]
  %v73 = vld [vmem:[%s3 + $0x8] sm:$0xf]
  %v74 = vld [vmem:[%s3 + $0xc] sm:$0xf]
  %v75 = vld [vmem:[%s4] sm:$0x1]
  %v77 = vlaneseq
  %v78 = vshrl.u32 %v77, 7
  %v79 = vsub.s32 0, %v78
  %v80 = vrot.slane %v75, %v79
  %v86 = vunpack.c.l.b16 %v71
  %v87 = vunpack.c.l.b16 %v72
  %v88 = vunpack.c.l.b16 %v73
  %v89 = vunpack.c.l.b16 %v74
  %v90 = vpack.c.b16 %v87, %v86
  %v91 = vpack.c.b16 %v89, %v88
  %vm94 = vcmask 261120
  %v96 = vsel %vm94, %v69, 0
  %v99 = vsel %vm94, %v70, 0
  %101 = vmatprep.subr.bf16.mxu0 0
  %102 = vmatpush1.bf16.msra.mxu0 0
  %103 = vmatprep.subr.bf16.mxu0 0
  %104 = vmatpush1.bf16.msra.mxu0 0
  %105 = vmatprep.subr.bf16.mxu0 0
  %106 = vmatpush1.bf16.msra.mxu0 0
  %107 = vmatprep.subr.bf16.mxu0 0
  %108 = vmatpush1.bf16.msra.mxu0 0
  %109 = vmatprep.subr.bf16.mxu0 0
  %110 = vmatpush1.bf16.msra.mxu0 0
  %111 = vmatprep.subr.bf16.mxu0 0
  %112 = vmatpush1.bf16.msra.mxu0 0
  %113 = vmatprep.subr.bf16.mxu0 0
  %114 = vmatpush1.bf16.msra.mxu0 %v91
  %115 = vmatprep.subr.bf16.mxu0 0
  %116 = vmatpush1.bf16.msra.mxu0 %v90
  %117 = vmatprep.subr.bf16.mxu0 0
  %118 = vmatpush2.bf16.msra.mxu0 0
  %119 = vmatprep.subr.bf16.mxu0 0
  %120 = vmatpush2.bf16.msra.mxu0 0
  %121 = vmatprep.subr.bf16.mxu0 0
  %122 = vmatpush2.bf16.msra.mxu0 0
  %123 = vmatprep.subr.bf16.mxu0 0
  %124 = vmatpush2.bf16.msra.mxu0 0
  %125 = vmatprep.subr.bf16.mxu0 0
  %126 = vmatpush2.bf16.msra.mxu0 0
  %127 = vmatprep.subr.bf16.mxu0 0
  %128 = vmatpush2.bf16.msra.mxu0 0
  %129 = vmatprep.subr.bf16.mxu0 0
  %130 = vmatpush2.bf16.msra.mxu0 0
  %131 = vmatprep.subr.bf16.mxu0 0
  %132 = vmatpush2.bf16.msra.mxu0 0
  %133 = vmatprep.mubr.bf16.mxu0 0
  %134 = vmatmul.mubr.bf16.gmra.mxu0 %v96
  %v135 = vpop.f32.mrf.mxu0
  %v136 = vadd.f32 %v80, %v135
  %v137 = vpop.f32.mrf.mxu0
  %v138 = vpop.f32.mrf.mxu0
  %v139 = vadd.f32 %v80, %v138
  %v140 = vpop.f32.mrf.mxu0
  %141 = vmatprep.mubr.bf16.mxu0 0
  %142 = vmatmul.mubr.bf16.gmra.mxu0 %v99
  %v143 = vpop.f32.mrf.mxu0
  %v144 = vadd.f32 %v80, %v143
  %v145 = vpop.f32.mrf.mxu0
  %v146 = vpop.f32.mrf.mxu0
  %v147 = vadd.f32 %v80, %v146
  %v148 = vpop.f32.mrf.mxu0
  %149 = vdwg.mxu0
  %v150 = vpack.c.bf16 %v58, %v57
  %v151 = vpack.c.bf16 %v60, %v59
  %v152 = vld [vmem:[%s5] sm:$0xf]
  %v153 = vld [vmem:[%s5 + $0x4] sm:$0xf]
  %v154 = vld [vmem:[%s5 + $0x8] sm:$0xf]
  %v155 = vld [vmem:[%s5 + $0xc] sm:$0xf]
  %v156 = vld [vmem:[%s6] sm:$0x1]
  %v158 = vlaneseq
  %v159 = vshrl.u32 %v158, 7
  %v160 = vsub.s32 0, %v159
  %v161 = vrot.slane %v156, %v160
  %v167 = vunpack.c.l.b16 %v152
  %v168 = vunpack.c.l.b16 %v153
  %v169 = vunpack.c.l.b16 %v154
  %v170 = vunpack.c.l.b16 %v155
  %v171 = vpack.c.b16 %v168, %v167
  %v172 = vpack.c.b16 %v170, %v169
  %v176 = vsel %vm94, %v150, 0
  %v179 = vsel %vm94, %v151, 0
  %181 = vmatprep.subr.bf16.mxu0 0
  %182 = vmatpush1.bf16.msra.mxu0 0
  %183 = vmatprep.subr.bf16.mxu0 0
  %184 = vmatpush1.bf16.msra.mxu0 0
  %185 = vmatprep.subr.bf16.mxu0 0
  %186 = vmatpush1.bf16.msra.mxu0 0
  %187 = vmatprep.subr.bf16.mxu0 0
  %188 = vmatpush1.bf16.msra.mxu0 0
  %189 = vmatprep.subr.bf16.mxu0 0
  %190 = vmatpush1.bf16.msra.mxu0 0
  %191 = vmatprep.subr.bf16.mxu0 0
  %192 = vmatpush1.bf16.msra.mxu0 0
  %193 = vmatprep.subr.bf16.mxu0 0
  %194 = vmatpush1.bf16.msra.mxu0 %v172
  %195 = vmatprep.subr.bf16.mxu0 0
  %196 = vmatpush1.bf16.msra.mxu0 %v171
  %197 = vmatprep.subr.bf16.mxu0 0
  %198 = vmatpush2.bf16.msra.mxu0 0
  %199 = vmatprep.subr.bf16.mxu0 0
  %200 = vmatpush2.bf16.msra.mxu0 0
  %201 = vmatprep.subr.bf16.mxu0 0
  %202 = vmatpush2.bf16.msra.mxu0 0
  %203 = vmatprep.subr.bf16.mxu0 0
  %204 = vmatpush2.bf16.msra.mxu0 0
  %205 = vmatprep.subr.bf16.mxu0 0
  %206 = vmatpush2.bf16.msra.mxu0 0
  %207 = vmatprep.subr.bf16.mxu0 0
  %208 = vmatpush2.bf16.msra.mxu0 0
  %209 = vmatprep.subr.bf16.mxu0 0
  %210 = vmatpush2.bf16.msra.mxu0 0
  %211 = vmatprep.subr.bf16.mxu0 0
  %212 = vmatpush2.bf16.msra.mxu0 0
  %213 = vmatprep.mubr.bf16.mxu0 0
  %214 = vmatmul.mubr.bf16.gmra.mxu0 %v176
  %v215 = vpop.f32.mrf.mxu0
  %v216 = vadd.f32 %v161, %v215
  %v217 = vpop.f32.mrf.mxu0
  %v218 = vpop.f32.mrf.mxu0
  %v219 = vadd.f32 %v161, %v218
  %v220 = vpop.f32.mrf.mxu0
  %221 = vmatprep.mubr.bf16.mxu0 0
  %222 = vmatmul.mubr.bf16.gmra.mxu0 %v179
  %v223 = vpop.f32.mrf.mxu0
  %v224 = vadd.f32 %v161, %v223
  %v225 = vpop.f32.mrf.mxu0
  %v226 = vpop.f32.mrf.mxu0
  %v227 = vadd.f32 %v161, %v226
  %v228 = vpop.f32.mrf.mxu0
  %229 = vdwg.mxu0
  %v230 = vpack.c.bf16 %v139, %v136
  %v231 = vpack.c.bf16 %v147, %v144
  %v232 = vpack.c.bf16 %v219, %v216
  %v233 = vpack.c.bf16 %v227, %v224
  %v234 = vld [vmem:[%s2] sm:$0x1]
  %v235 = vld [vmem:[%s2 + $0x1] sm:$0x1]
  %v237 = vlaneseq
  %v238 = vshrl.u32 %v237, 7
  %v239 = vsub.s32 0, %v238
  %v240 = vrot.slane %v234, %v239
  %243 = vrot.lane.b32.xlu0 %v230, 96
  %v244 = vpop.permute.xlu0 %243
  %vm245 = vcmask 64512
  %v247 = vsel %vm245, %v230, 0
  %v250 = vsel %vm245, %v244, 0
  %252 = vmatprep.subr.bf16.mxu0 0
  %253 = vmatpush1.bf16.xpose.msra.mxu0 0
  %254 = vmatprep.subr.bf16.mxu0 0
  %255 = vmatpush1.bf16.xpose.msra.mxu0 0
  %256 = vmatprep.subr.bf16.mxu0 0
  %257 = vmatpush1.bf16.xpose.msra.mxu0 0
  %258 = vmatprep.subr.bf16.mxu0 0
  %259 = vmatpush1.bf16.xpose.msra.mxu0 0
  %260 = vmatprep.subr.bf16.mxu0 0
  %261 = vmatpush1.bf16.xpose.msra.mxu0 0
  %262 = vmatprep.subr.bf16.mxu0 0
  %263 = vmatpush1.bf16.xpose.msra.mxu0 0
  %264 = vmatprep.subr.bf16.mxu0 0
  %265 = vmatpush1.bf16.xpose.msra.mxu0 0
  %266 = vmatprep.subr.bf16.mxu0 0
  %267 = vmatpush1.bf16.xpose.msra.mxu0 %v250
  %268 = vmatprep.subr.bf16.mxu0 0
  %269 = vmatpush2.bf16.xpose.msra.mxu0 0
  %270 = vmatprep.subr.bf16.mxu0 0
  %271 = vmatpush2.bf16.xpose.msra.mxu0 0
  %272 = vmatprep.subr.bf16.mxu0 0
  %273 = vmatpush2.bf16.xpose.msra.mxu0 0
  %274 = vmatprep.subr.bf16.mxu0 0
  %275 = vmatpush2.bf16.xpose.msra.mxu0 0
  %276 = vmatprep.subr.bf16.mxu0 0
  %277 = vmatpush2.bf16.xpose.msra.mxu0 0
  %278 = vmatprep.subr.bf16.mxu0 0
  %279 = vmatpush2.bf16.xpose.msra.mxu0 0
  %280 = vmatprep.subr.bf16.mxu0 0
  %281 = vmatpush2.bf16.xpose.msra.mxu0 0
  %282 = vmatprep.subr.bf16.mxu0 0
  %283 = vmatpush2.bf16.xpose.msra.mxu0 0
  %284 = vmatprep.mubr.bf16.mxu0 0
  %285 = vmatmul.mubr.bf16.gmra.mxu0 %v247
  %v286 = vpop.f32.mrf.mxu0
  %v287 = vadd.f32 %v240, %v286
  %v288 = vpop.f32.mrf.mxu0
  %v289 = vpop.f32.mrf.mxu0
  %v290 = vadd.f32 %v240, %v289
  %v291 = vpop.f32.mrf.mxu0
  %292 = vdwg.mxu0
  %vm293 = vcmask 130048
  %v294 = vsel %vm293, %v287, -inf
  %295 = vmax.xlane.f32.xlu0 %v294
  %v296 = vpop.xlane.xlu0 %295
  %v297 = vsel %vm293, %v290, -inf
  %298 = vmax.xlane.f32.xlu0 %v297
  %v299 = vpop.xlane.xlu0 %298
  %v300 = vsub.f32 %v287, %v296
  %v301 = vsub.f32 %v290, %v299
  %v302 = vmul.f32 %v300, 1.442695
  %v303 = vpow.pop %v302
  %v304 = vmul.f32 %v301, 1.442695
  %v305 = vpow.pop %v304
  %v306 = vsel %vm293, %v303, 0.0
  %307 = vadd.xlane.f32.xlu0 %v306
  %v308 = vpop.xlane.xlu0 %307
  %v309 = vsel %vm293, %v305, 0.0
  %310 = vadd.xlane.f32.xlu0 %v309
  %v311 = vpop.xlane.xlu0 %310
  %v312 = vpack.c.bf16 %v305, %v303
  %v314 = vsel %vm293, %v312, 0
  %316 = vmatprep.subr.bf16.mxu0 0
  %317 = vmatpush1.bf16.msra.mxu0 0
  %318 = vmatprep.subr.bf16.mxu0 0
  %319 = vmatpush1.bf16.msra.mxu0 0
  %320 = vmatprep.subr.bf16.mxu0 0
  %321 = vmatpush1.bf16.msra.mxu0 0
  %322 = vmatprep.subr.bf16.mxu0 0
  %323 = vmatpush1.bf16.msra.mxu0 0
  %324 = vmatprep.subr.bf16.mxu0 0
  %325 = vmatpush1.bf16.msra.mxu0 0
  %326 = vmatprep.subr.bf16.mxu0 0
  %327 = vmatpush1.bf16.msra.mxu0 0
  %328 = vmatprep.subr.bf16.mxu0 0
  %329 = vmatpush1.bf16.msra.mxu0 0
  %330 = vmatprep.subr.bf16.mxu0 0
  %331 = vmatpush1.bf16.msra.mxu0 %v232
  %332 = vmatprep.subr.bf16.mxu0 0
  %333 = vmatpush2.bf16.msra.mxu0 0
  %334 = vmatprep.subr.bf16.mxu0 0
  %335 = vmatpush2.bf16.msra.mxu0 0
  %336 = vmatprep.subr.bf16.mxu0 0
  %337 = vmatpush2.bf16.msra.mxu0 0
  %338 = vmatprep.subr.bf16.mxu0 0
  %339 = vmatpush2.bf16.msra.mxu0 0
  %340 = vmatprep.subr.bf16.mxu0 0
  %341 = vmatpush2.bf16.msra.mxu0 0
  %342 = vmatprep.subr.bf16.mxu0 0
  %343 = vmatpush2.bf16.msra.mxu0 0
  %344 = vmatprep.subr.bf16.mxu0 0
  %345 = vmatpush2.bf16.msra.mxu0 0
  %346 = vmatprep.subr.bf16.mxu0 0
  %347 = vmatpush2.bf16.msra.mxu0 0
  %348 = vmatprep.mubr.bf16.mxu0 0
  %349 = vmatmul.mubr.bf16.gmra.mxu0 %v314
  %v350 = vpop.f32.mrf.mxu0
  %v351 = vadd.f32 0.0, %v350
  %v352 = vpop.f32.mrf.mxu0
  %v353 = vpop.f32.mrf.mxu0
  %v354 = vadd.f32 0.0, %v353
  %v355 = vpop.f32.mrf.mxu0
  %356 = vdwg.mxu0
  %v357 = vrcp.pop %v308
  %v358 = vrcp.pop %v311
  %v359 = vmul.f32 %v351, %v357
  %v360 = vmul.f32 %v354, %v358
  %361 = vst.msk [vmem:[#allocation2] sm:$0xff] %vm245, %v359
  %362 = vst.msk [vmem:[#allocation2 + $0x8] sm:$0xff] %vm245, %v360
  %363 = vrot.lane.b32.xlu0 %v230, 120
  %v364 = vpop.permute.xlu0 %363
  %365 = vrot.lane.b32.xlu0 %v230, 88
  %v366 = vpop.permute.xlu0 %365
  %v368 = vsel %vm245, %v364, 0
  %v371 = vsel %vm245, %v366, 0
  %373 = vmatprep.subr.bf16.mxu0 0
  %374 = vmatpush1.bf16.xpose.msra.mxu0 0
  %375 = vmatprep.subr.bf16.mxu0 0
  %376 = vmatpush1.bf16.xpose.msra.mxu0 0
  %377 = vmatprep.subr.bf16.mxu0 0
  %378 = vmatpush1.bf16.xpose.msra.mxu0 0
  %379 = vmatprep.subr.bf16.mxu0 0
  %380 = vmatpush1.bf16.xpose.msra.mxu0 0
  %381 = vmatprep.subr.bf16.mxu0 0
  %382 = vmatpush1.bf16.xpose.msra.mxu0 0
  %383 = vmatprep.subr.bf16.mxu0 0
  %384 = vmatpush1.bf16.xpose.msra.mxu0 0
  %385 = vmatprep.subr.bf16.mxu0 0
  %386 = vmatpush1.bf16.xpose.msra.mxu0 0
  %387 = vmatprep.subr.bf16.mxu0 0
  %388 = vmatpush1.bf16.xpose.msra.mxu0 %v371
  %389 = vmatprep.subr.bf16.mxu0 0
  %390 = vmatpush2.bf16.xpose.msra.mxu0 0
  %391 = vmatprep.subr.bf16.mxu0 0
  %392 = vmatpush2.bf16.xpose.msra.mxu0 0
  %393 = vmatprep.subr.bf16.mxu0 0
  %394 = vmatpush2.bf16.xpose.msra.mxu0 0
  %395 = vmatprep.subr.bf16.mxu0 0
  %396 = vmatpush2.bf16.xpose.msra.mxu0 0
  %397 = vmatprep.subr.bf16.mxu0 0
  %398 = vmatpush2.bf16.xpose.msra.mxu0 0
  %399 = vmatprep.subr.bf16.mxu0 0
  %400 = vmatpush2.bf16.xpose.msra.mxu0 0
  %401 = vmatprep.subr.bf16.mxu0 0
  %402 = vmatpush2.bf16.xpose.msra.mxu0 0
  %403 = vmatprep.subr.bf16.mxu0 0
  %404 = vmatpush2.bf16.xpose.msra.mxu0 0
  %405 = vmatprep.mubr.bf16.mxu0 0
  %406 = vmatmul.mubr.bf16.gmra.mxu0 %v368
  %v407 = vpop.f32.mrf.mxu0
  %v408 = vadd.f32 %v240, %v407
  %v409 = vpop.f32.mrf.mxu0
  %v410 = vpop.f32.mrf.mxu0
  %v411 = vadd.f32 %v240, %v410
  %v412 = vpop.f32.mrf.mxu0
  %413 = vdwg.mxu0
  %v414 = vsel %vm293, %v408, -inf
  %415 = vmax.xlane.f32.xlu0 %v414
  %v416 = vpop.xlane.xlu0 %415
  %v417 = vsel %vm293, %v411, -inf
  %418 = vmax.xlane.f32.xlu0 %v417
  %v419 = vpop.xlane.xlu0 %418
  %v420 = vsub.f32 %v408, %v416
  %v421 = vsub.f32 %v411, %v419
  %v422 = vmul.f32 %v420, 1.442695
  %v423 = vpow.pop %v422
  %v424 = vmul.f32 %v421, 1.442695
  %v425 = vpow.pop %v424
  %v426 = vsel %vm293, %v423, 0.0
  %427 = vadd.xlane.f32.xlu0 %v426
  %v428 = vpop.xlane.xlu0 %427
  %v429 = vsel %vm293, %v425, 0.0
  %430 = vadd.xlane.f32.xlu0 %v429
  %v431 = vpop.xlane.xlu0 %430
  %v432 = vpack.c.bf16 %v425, %v423
  %434 = vrot.lane.b32.xlu0 %v232, 120
  %v435 = vpop.permute.xlu0 %434
  %v438 = vsel %vm293, %v432, 0
  %440 = vmatprep.subr.bf16.mxu0 0
  %441 = vmatpush1.bf16.msra.mxu0 0
  %442 = vmatprep.subr.bf16.mxu0 0
  %443 = vmatpush1.bf16.msra.mxu0 0
  %444 = vmatprep.subr.bf16.mxu0 0
  %445 = vmatpush1.bf16.msra.mxu0 0
  %446 = vmatprep.subr.bf16.mxu0 0
  %447 = vmatpush1.bf16.msra.mxu0 0
  %448 = vmatprep.subr.bf16.mxu0 0
  %449 = vmatpush1.bf16.msra.mxu0 0
  %450 = vmatprep.subr.bf16.mxu0 0
  %451 = vmatpush1.bf16.msra.mxu0 0
  %452 = vmatprep.subr.bf16.mxu0 0
  %453 = vmatpush1.bf16.msra.mxu0 0
  %454 = vmatprep.subr.bf16.mxu0 0
  %455 = vmatpush1.bf16.msra.mxu0 %v435
  %456 = vmatprep.subr.bf16.mxu0 0
  %457 = vmatpush2.bf16.msra.mxu0 0
  %458 = vmatprep.subr.bf16.mxu0 0
  %459 = vmatpush2.bf16.msra.mxu0 0
  %460 = vmatprep.subr.bf16.mxu0 0
  %461 = vmatpush2.bf16.msra.mxu0 0
  %462 = vmatprep.subr.bf16.mxu0 0
  %463 = vmatpush2.bf16.msra.mxu0 0
  %464 = vmatprep.subr.bf16.mxu0 0
  %465 = vmatpush2.bf16.msra.mxu0 0
  %466 = vmatprep.subr.bf16.mxu0 0
  %467 = vmatpush2.bf16.msra.mxu0 0
  %468 = vmatprep.subr.bf16.mxu0 0
  %469 = vmatpush2.bf16.msra.mxu0 0
  %470 = vmatprep.subr.bf16.mxu0 0
  %471 = vmatpush2.bf16.msra.mxu0 0
  %472 = vmatprep.mubr.bf16.mxu0 0
  %473 = vmatmul.mubr.bf16.gmra.mxu0 %v438
  %v474 = vpop.f32.mrf.mxu0
  %v475 = vadd.f32 0.0, %v474
  %v476 = vpop.f32.mrf.mxu0
  %v477 = vpop.f32.mrf.mxu0
  %v478 = vadd.f32 0.0, %v477
  %v479 = vpop.f32.mrf.mxu0
  %480 = vdwg.mxu0
  %v481 = vrcp.pop %v428
  %v482 = vrcp.pop %v431
  %v483 = vmul.f32 %v475, %v481
  %v484 = vmul.f32 %v478, %v482
  %487 = vrot.lane.b32.xlu0 %v483, 8
  %v488 = vpop.permute.xlu0 %487
  %489 = vrot.lane.b32.xlu0 %v484, 8
  %v490 = vpop.permute.xlu0 %489
  %vm493 = vcmask 130112
  %494 = vst.msk [vmem:[#allocation2] sm:$0xff] %vm493, %v488
  %495 = vst.msk [vmem:[#allocation2 + $0x8] sm:$0xff] %vm493, %v490
  %496 = vrot.lane.b32.xlu0 %v230, 112
  %v497 = vpop.permute.xlu0 %496
  %498 = vrot.lane.b32.xlu0 %v230, 80
  %v499 = vpop.permute.xlu0 %498
  %v501 = vsel %vm245, %v497, 0
  %v504 = vsel %vm245, %v499, 0
  %506 = vmatprep.subr.bf16.mxu0 0
  %507 = vmatpush1.bf16.xpose.msra.mxu0 0
  %508 = vmatprep.subr.bf16.mxu0 0
  %509 = vmatpush1.bf16.xpose.msra.mxu0 0
  %510 = vmatprep.subr.bf16.mxu0 0
  %511 = vmatpush1.bf16.xpose.msra.mxu0 0
  %512 = vmatprep.subr.bf16.mxu0 0
  %513 = vmatpush1.bf16.xpose.msra.mxu0 0
  %514 = vmatprep.subr.bf16.mxu0 0
  %515 = vmatpush1.bf16.xpose.msra.mxu0 0
  %516 = vmatprep.subr.bf16.mxu0 0
  %517 = vmatpush1.bf16.xpose.msra.mxu0 0
  %518 = vmatprep.subr.bf16.mxu0 0
  %519 = vmatpush1.bf16.xpose.msra.mxu0 0
  %520 = vmatprep.subr.bf16.mxu0 0
  %521 = vmatpush1.bf16.xpose.msra.mxu0 %v504
  %522 = vmatprep.subr.bf16.mxu0 0
  %523 = vmatpush2.bf16.xpose.msra.mxu0 0
  %524 = vmatprep.subr.bf16.mxu0 0
  %525 = vmatpush2.bf16.xpose.msra.mxu0 0
  %526 = vmatprep.subr.bf16.mxu0 0
  %527 = vmatpush2.bf16.xpose.msra.mxu0 0
  %528 = vmatprep.subr.bf16.mxu0 0
  %529 = vmatpush2.bf16.xpose.msra.mxu0 0
  %530 = vmatprep.subr.bf16.mxu0 0
  %531 = vmatpush2.bf16.xpose.msra.mxu0 0
  %532 = vmatprep.subr.bf16.mxu0 0
  %533 = vmatpush2.bf16.xpose.msra.mxu0 0
  %534 = vmatprep.subr.bf16.mxu0 0
  %535 = vmatpush2.bf16.xpose.msra.mxu0 0
  %536 = vmatprep.subr.bf16.mxu0 0
  %537 = vmatpush2.bf16.xpose.msra.mxu0 0
  %538 = vmatprep.mubr.bf16.mxu0 0
  %539 = vmatmul.mubr.bf16.gmra.mxu0 %v501
  %v540 = vpop.f32.mrf.mxu0
  %v541 = vadd.f32 %v240, %v540
  %v542 = vpop.f32.mrf.mxu0
  %v543 = vpop.f32.mrf.mxu0
  %v544 = vadd.f32 %v240, %v543
  %v545 = vpop.f32.mrf.mxu0
  %546 = vdwg.mxu0
  %v547 = vsel %vm293, %v541, -inf
  %548 = vmax.xlane.f32.xlu0 %v547
  %v549 = vpop.xlane.xlu0 %548
  %v550 = vsel %vm293, %v544, -inf
  %551 = vmax.xlane.f32.xlu0 %v550
  %v552 = vpop.xlane.xlu0 %551
  %v553 = vsub.f32 %v541, %v549
  %v554 = vsub.f32 %v544, %v552
  %v555 = vmul.f32 %v553, 1.442695
  %v556 = vpow.pop %v555
  %v557 = vmul.f32 %v554, 1.442695
  %v558 = vpow.pop %v557
  %v559 = vsel %vm293, %v556, 0.0
  %560 = vadd.xlane.f32.xlu0 %v559
  %v561 = vpop.xlane.xlu0 %560
  %v562 = vsel %vm293, %v558, 0.0
  %563 = vadd.xlane.f32.xlu0 %v562
  %v564 = vpop.xlane.xlu0 %563
  %v565 = vpack.c.bf16 %v558, %v556
  %566 = vrot.lane.b32.xlu0 %v232, 112
  %v567 = vpop.permute.xlu0 %566
  %v570 = vsel %vm293, %v565, 0
  %572 = vmatprep.subr.bf16.mxu0 0
  %573 = vmatpush1.bf16.msra.mxu0 0
  %574 = vmatprep.subr.bf16.mxu0 0
  %575 = vmatpush1.bf16.msra.mxu0 0
  %576 = vmatprep.subr.bf16.mxu0 0
  %577 = vmatpush1.bf16.msra.mxu0 0
  %578 = vmatprep.subr.bf16.mxu0 0
  %579 = vmatpush1.bf16.msra.mxu0 0
  %580 = vmatprep.subr.bf16.mxu0 0
  %581 = vmatpush1.bf16.msra.mxu0 0
  %582 = vmatprep.subr.bf16.mxu0 0
  %583 = vmatpush1.bf16.msra.mxu0 0
  %584 = vmatprep.subr.bf16.mxu0 0
  %585 = vmatpush1.bf16.msra.mxu0 0
  %586 = vmatprep.subr.bf16.mxu0 0
  %587 = vmatpush1.bf16.msra.mxu0 %v567
  %588 = vmatprep.subr.bf16.mxu0 0
  %589 = vmatpush2.bf16.msra.mxu0 0
  %590 = vmatprep.subr.bf16.mxu0 0
  %591 = vmatpush2.bf16.msra.mxu0 0
  %592 = vmatprep.subr.bf16.mxu0 0
  %593 = vmatpush2.bf16.msra.mxu0 0
  %594 = vmatprep.subr.bf16.mxu0 0
  %595 = vmatpush2.bf16.msra.mxu0 0
  %596 = vmatprep.subr.bf16.mxu0 0
  %597 = vmatpush2.bf16.msra.mxu0 0
  %598 = vmatprep.subr.bf16.mxu0 0
  %599 = vmatpush2.bf16.msra.mxu0 0
  %600 = vmatprep.subr.bf16.mxu0 0
  %601 = vmatpush2.bf16.msra.mxu0 0
  %602 = vmatprep.subr.bf16.mxu0 0
  %603 = vmatpush2.bf16.msra.mxu0 0
  %604 = vmatprep.mubr.bf16.mxu0 0
  %605 = vmatmul.mubr.bf16.gmra.mxu0 %v570
  %v606 = vpop.f32.mrf.mxu0
  %v607 = vadd.f32 0.0, %v606
  %v608 = vpop.f32.mrf.mxu0
  %v609 = vpop.f32.mrf.mxu0
  %v610 = vadd.f32 0.0, %v609
  %v611 = vpop.f32.mrf.mxu0
  %612 = vdwg.mxu0
  %v613 = vrcp.pop %v561
  %v614 = vrcp.pop %v564
  %v615 = vmul.f32 %v607, %v613
  %v616 = vmul.f32 %v610, %v614
  %619 = vrot.lane.b32.xlu0 %v615, 16
  %v620 = vpop.permute.xlu0 %619
  %621 = vrot.lane.b32.xlu0 %v616, 16
  %v622 = vpop.permute.xlu0 %621
  %vm625 = vcmask 195712
  %626 = vst.msk [vmem:[#allocation2] sm:$0xff] %vm625, %v620
  %627 = vst.msk [vmem:[#allocation2 + $0x8] sm:$0xff] %vm625, %v622
  %628 = vrot.lane.b32.xlu0 %v230, 104
  %v629 = vpop.permute.xlu0 %628
  %630 = vrot.lane.b32.xlu0 %v230, 72
  %v631 = vpop.permute.xlu0 %630
  %v633 = vsel %vm245, %v629, 0
  %v636 = vsel %vm245, %v631, 0
  %638 = vmatprep.subr.bf16.mxu0 0
  %639 = vmatpush1.bf16.xpose.msra.mxu0 0
  %640 = vmatprep.subr.bf16.mxu0 0
  %641 = vmatpush1.bf16.xpose.msra.mxu0 0
  %642 = vmatprep.subr.bf16.mxu0 0
  %643 = vmatpush1.bf16.xpose.msra.mxu0 0
  %644 = vmatprep.subr.bf16.mxu0 0
  %645 = vmatpush1.bf16.xpose.msra.mxu0 0
  %646 = vmatprep.subr.bf16.mxu0 0
  %647 = vmatpush1.bf16.xpose.msra.mxu0 0
  %648 = vmatprep.subr.bf16.mxu0 0
  %649 = vmatpush1.bf16.xpose.msra.mxu0 0
  %650 = vmatprep.subr.bf16.mxu0 0
  %651 = vmatpush1.bf16.xpose.msra.mxu0 0
  %652 = vmatprep.subr.bf16.mxu0 0
  %653 = vmatpush1.bf16.xpose.msra.mxu0 %v636
  %654 = vmatprep.subr.bf16.mxu0 0
  %655 = vmatpush2.bf16.xpose.msra.mxu0 0
  %656 = vmatprep.subr.bf16.mxu0 0
  %657 = vmatpush2.bf16.xpose.msra.mxu0 0
  %658 = vmatprep.subr.bf16.mxu0 0
  %659 = vmatpush2.bf16.xpose.msra.mxu0 0
  %660 = vmatprep.subr.bf16.mxu0 0
  %661 = vmatpush2.bf16.xpose.msra.mxu0 0
  %662 = vmatprep.subr.bf16.mxu0 0
  %663 = vmatpush2.bf16.xpose.msra.mxu0 0
  %664 = vmatprep.subr.bf16.mxu0 0
  %665 = vmatpush2.bf16.xpose.msra.mxu0 0
  %666 = vmatprep.subr.bf16.mxu0 0
  %667 = vmatpush2.bf16.xpose.msra.mxu0 0
  %668 = vmatprep.subr.bf16.mxu0 0
  %669 = vmatpush2.bf16.xpose.msra.mxu0 0
  %670 = vmatprep.mubr.bf16.mxu0 0
  %671 = vmatmul.mubr.bf16.gmra.mxu0 %v633
  %v672 = vpop.f32.mrf.mxu0
  %v673 = vadd.f32 %v240, %v672
  %v674 = vpop.f32.mrf.mxu0
  %v675 = vpop.f32.mrf.mxu0
  %v676 = vadd.f32 %v240, %v675
  %v677 = vpop.f32.mrf.mxu0
  %678 = vdwg.mxu0
  %v679 = vsel %vm293, %v673, -inf
  %680 = vmax.xlane.f32.xlu0 %v679
  %v681 = vpop.xlane.xlu0 %680
  %v682 = vsel %vm293, %v676, -inf
  %683 = vmax.xlane.f32.xlu0 %v682
  %v684 = vpop.xlane.xlu0 %683
  %v685 = vsub.f32 %v673, %v681
  %v686 = vsub.f32 %v676, %v684
  %v687 = vmul.f32 %v685, 1.442695
  %v688 = vpow.pop %v687
  %v689 = vmul.f32 %v686, 1.442695
  %v690 = vpow.pop %v689
  %v691 = vsel %vm293, %v688, 0.0
  %692 = vadd.xlane.f32.xlu0 %v691
  %v693 = vpop.xlane.xlu0 %692
  %v694 = vsel %vm293, %v690, 0.0
  %695 = vadd.xlane.f32.xlu0 %v694
  %v696 = vpop.xlane.xlu0 %695
  %v697 = vpack.c.bf16 %v690, %v688
  %698 = vrot.lane.b32.xlu0 %v232, 104
  %v699 = vpop.permute.xlu0 %698
  %v702 = vsel %vm293, %v697, 0
  %704 = vmatprep.subr.bf16.mxu0 0
  %705 = vmatpush1.bf16.msra.mxu0 0
  %706 = vmatprep.subr.bf16.mxu0 0
  %707 = vmatpush1.bf16.msra.mxu0 0
  %708 = vmatprep.subr.bf16.mxu0 0
  %709 = vmatpush1.bf16.msra.mxu0 0
  %710 = vmatprep.subr.bf16.mxu0 0
  %711 = vmatpush1.bf16.msra.mxu0 0
  %712 = vmatprep.subr.bf16.mxu0 0
  %713 = vmatpush1.bf16.msra.mxu0 0
  %714 = vmatprep.subr.bf16.mxu0 0
  %715 = vmatpush1.bf16.msra.mxu0 0
  %716 = vmatprep.subr.bf16.mxu0 0
  %717 = vmatpush1.bf16.msra.mxu0 0
  %718 = vmatprep.subr.bf16.mxu0 0
  %719 = vmatpush1.bf16.msra.mxu0 %v699
  %720 = vmatprep.subr.bf16.mxu0 0
  %721 = vmatpush2.bf16.msra.mxu0 0
  %722 = vmatprep.subr.bf16.mxu0 0
  %723 = vmatpush2.bf16.msra.mxu0 0
  %724 = vmatprep.subr.bf16.mxu0 0
  %725 = vmatpush2.bf16.msra.mxu0 0
  %726 = vmatprep.subr.bf16.mxu0 0
  %727 = vmatpush2.bf16.msra.mxu0 0
  %728 = vmatprep.subr.bf16.mxu0 0
  %729 = vmatpush2.bf16.msra.mxu0 0
  %730 = vmatprep.subr.bf16.mxu0 0
  %731 = vmatpush2.bf16.msra.mxu0 0
  %732 = vmatprep.subr.bf16.mxu0 0
  %733 = vmatpush2.bf16.msra.mxu0 0
  %734 = vmatprep.subr.bf16.mxu0 0
  %735 = vmatpush2.bf16.msra.mxu0 0
  %736 = vmatprep.mubr.bf16.mxu0 0
  %737 = vmatmul.mubr.bf16.gmra.mxu0 %v702
  %v738 = vpop.f32.mrf.mxu0
  %v739 = vadd.f32 0.0, %v738
  %v740 = vpop.f32.mrf.mxu0
  %v741 = vpop.f32.mrf.mxu0
  %v742 = vadd.f32 0.0, %v741
  %v743 = vpop.f32.mrf.mxu0
  %744 = vdwg.mxu0
  %v745 = vrcp.pop %v693
  %v746 = vrcp.pop %v696
  %v747 = vmul.f32 %v739, %v745
  %v748 = vmul.f32 %v742, %v746
  %751 = vrot.lane.b32.xlu0 %v747, 24
  %v752 = vpop.permute.xlu0 %751
  %753 = vrot.lane.b32.xlu0 %v748, 24
  %v754 = vpop.permute.xlu0 %753
  %vm757 = vcmask 261312
  %758 = vst.msk [vmem:[#allocation2] sm:$0xff] %vm757, %v752
  %759 = vst.msk [vmem:[#allocation2 + $0x8] sm:$0xff] %vm757, %v754
  %v761 = vlaneseq
  %v762 = vshrl.u32 %v761, 7
  %v763 = vsub.s32 0, %v762
  %v764 = vrot.slane %v235, %v763
  %767 = vrot.lane.b32.xlu0 %v231, 96
  %v768 = vpop.permute.xlu0 %767
  %v770 = vsel %vm245, %v231, 0
  %v773 = vsel %vm245, %v768, 0
  %775 = vmatprep.subr.bf16.mxu0 0
  %776 = vmatpush1.bf16.xpose.msra.mxu0 0
  %777 = vmatprep.subr.bf16.mxu0 0
  %778 = vmatpush1.bf16.xpose.msra.mxu0 0
  %779 = vmatprep.subr.bf16.mxu0 0
  %780 = vmatpush1.bf16.xpose.msra.mxu0 0
  %781 = vmatprep.subr.bf16.mxu0 0
  %782 = vmatpush1.bf16.xpose.msra.mxu0 0
  %783 = vmatprep.subr.bf16.mxu0 0
  %784 = vmatpush1.bf16.xpose.msra.mxu0 0
  %785 = vmatprep.subr.bf16.mxu0 0
  %786 = vmatpush1.bf16.xpose.msra.mxu0 0
  %787 = vmatprep.subr.bf16.mxu0 0
  %788 = vmatpush1.bf16.xpose.msra.mxu0 0
  %789 = vmatprep.subr.bf16.mxu0 0
  %790 = vmatpush1.bf16.xpose.msra.mxu0 %v773
  %791 = vmatprep.subr.bf16.mxu0 0
  %792 = vmatpush2.bf16.xpose.msra.mxu0 0
  %793 = vmatprep.subr.bf16.mxu0 0
  %794 = vmatpush2.bf16.xpose.msra.mxu0 0
  %795 = vmatprep.subr.bf16.mxu0 0
  %796 = vmatpush2.bf16.xpose.msra.mxu0 0
  %797 = vmatprep.subr.bf16.mxu0 0
  %798 = vmatpush2.bf16.xpose.msra.mxu0 0
  %799 = vmatprep.subr.bf16.mxu0 0
  %800 = vmatpush2.bf16.xpose.msra.mxu0 0
  %801 = vmatprep.subr.bf16.mxu0 0
  %802 = vmatpush2.bf16.xpose.msra.mxu0 0
  %803 = vmatprep.subr.bf16.mxu0 0
  %804 = vmatpush2.bf16.xpose.msra.mxu0 0
  %805 = vmatprep.subr.bf16.mxu0 0
  %806 = vmatpush2.bf16.xpose.msra.mxu0 0
  %807 = vmatprep.mubr.bf16.mxu0 0
  %808 = vmatmul.mubr.bf16.gmra.mxu0 %v770
  %v809 = vpop.f32.mrf.mxu0
  %v810 = vadd.f32 %v764, %v809
  %v811 = vpop.f32.mrf.mxu0
  %v812 = vpop.f32.mrf.mxu0
  %v813 = vadd.f32 %v764, %v812
  %v814 = vpop.f32.mrf.mxu0
  %815 = vdwg.mxu0
  %v816 = vsel %vm293, %v810, -inf
  %817 = vmax.xlane.f32.xlu0 %v816
  %v818 = vpop.xlane.xlu0 %817
  %v819 = vsel %vm293, %v813, -inf
  %820 = vmax.xlane.f32.xlu0 %v819
  %v821 = vpop.xlane.xlu0 %820
  %v822 = vsub.f32 %v810, %v818
  %v823 = vsub.f32 %v813, %v821
  %v824 = vmul.f32 %v822, 1.442695
  %v825 = vpow.pop %v824
  %v826 = vmul.f32 %v823, 1.442695
  %v827 = vpow.pop %v826
  %v828 = vsel %vm293, %v825, 0.0
  %829 = vadd.xlane.f32.xlu0 %v828
  %v830 = vpop.xlane.xlu0 %829
  %v831 = vsel %vm293, %v827, 0.0
  %832 = vadd.xlane.f32.xlu0 %v831
  %v833 = vpop.xlane.xlu0 %832
  %v834 = vpack.c.bf16 %v827, %v825
  %v836 = vsel %vm293, %v834, 0
  %838 = vmatprep.subr.bf16.mxu0 0
  %839 = vmatpush1.bf16.msra.mxu0 0
  %840 = vmatprep.subr.bf16.mxu0 0
  %841 = vmatpush1.bf16.msra.mxu0 0
  %842 = vmatprep.subr.bf16.mxu0 0
  %843 = vmatpush1.bf16.msra.mxu0 0
  %844 = vmatprep.subr.bf16.mxu0 0
  %845 = vmatpush1.bf16.msra.mxu0 0
  %846 = vmatprep.subr.bf16.mxu0 0
  %847 = vmatpush1.bf16.msra.mxu0 0
  %848 = vmatprep.subr.bf16.mxu0 0
  %849 = vmatpush1.bf16.msra.mxu0 0
  %850 = vmatprep.subr.bf16.mxu0 0
  %851 = vmatpush1.bf16.msra.mxu0 0
  %852 = vmatprep.subr.bf16.mxu0 0
  %853 = vmatpush1.bf16.msra.mxu0 %v233
  %854 = vmatprep.subr.bf16.mxu0 0
  %855 = vmatpush2.bf16.msra.mxu0 0
  %856 = vmatprep.subr.bf16.mxu0 0
  %857 = vmatpush2.bf16.msra.mxu0 0
  %858 = vmatprep.subr.bf16.mxu0 0
  %859 = vmatpush2.bf16.msra.mxu0 0
  %860 = vmatprep.subr.bf16.mxu0 0
  %861 = vmatpush2.bf16.msra.mxu0 0
  %862 = vmatprep.subr.bf16.mxu0 0
  %863 = vmatpush2.bf16.msra.mxu0 0
  %864 = vmatprep.subr.bf16.mxu0 0
  %865 = vmatpush2.bf16.msra.mxu0 0
  %866 = vmatprep.subr.bf16.mxu0 0
  %867 = vmatpush2.bf16.msra.mxu0 0
  %868 = vmatprep.subr.bf16.mxu0 0
  %869 = vmatpush2.bf16.msra.mxu0 0
  %870 = vmatprep.mubr.bf16.mxu0 0
  %871 = vmatmul.mubr.bf16.gmra.mxu0 %v836
  %v872 = vpop.f32.mrf.mxu0
  %v873 = vadd.f32 0.0, %v872
  %v874 = vpop.f32.mrf.mxu0
  %v875 = vpop.f32.mrf.mxu0
  %v876 = vadd.f32 0.0, %v875
  %v877 = vpop.f32.mrf.mxu0
  %878 = vdwg.mxu0
  %v879 = vrcp.pop %v830
  %v880 = vrcp.pop %v833
  %v881 = vmul.f32 %v873, %v879
  %v882 = vmul.f32 %v876, %v880
  %883 = vst.msk [vmem:[#allocation2 + $0x10] sm:$0xff] %vm245, %v881
  %884 = vst.msk [vmem:[#allocation2 + $0x18] sm:$0xff] %vm245, %v882
  %885 = vrot.lane.b32.xlu0 %v231, 120
  %v886 = vpop.permute.xlu0 %885
  %887 = vrot.lane.b32.xlu0 %v231, 88
  %v888 = vpop.permute.xlu0 %887
  %v890 = vsel %vm245, %v886, 0
  %v893 = vsel %vm245, %v888, 0
  %895 = vmatprep.subr.bf16.mxu0 0
  %896 = vmatpush1.bf16.xpose.msra.mxu0 0
  %897 = vmatprep.subr.bf16.mxu0 0
  %898 = vmatpush1.bf16.xpose.msra.mxu0 0
  %899 = vmatprep.subr.bf16.mxu0 0
  %900 = vmatpush1.bf16.xpose.msra.mxu0 0
  %901 = vmatprep.subr.bf16.mxu0 0
  %902 = vmatpush1.bf16.xpose.msra.mxu0 0
  %903 = vmatprep.subr.bf16.mxu0 0
  %904 = vmatpush1.bf16.xpose.msra.mxu0 0
  %905 = vmatprep.subr.bf16.mxu0 0
  %906 = vmatpush1.bf16.xpose.msra.mxu0 0
  %907 = vmatprep.subr.bf16.mxu0 0
  %908 = vmatpush1.bf16.xpose.msra.mxu0 0
  %909 = vmatprep.subr.bf16.mxu0 0
  %910 = vmatpush1.bf16.xpose.msra.mxu0 %v893
  %911 = vmatprep.subr.bf16.mxu0 0
  %912 = vmatpush2.bf16.xpose.msra.mxu0 0
  %913 = vmatprep.subr.bf16.mxu0 0
  %914 = vmatpush2.bf16.xpose.msra.mxu0 0
  %915 = vmatprep.subr.bf16.mxu0 0
  %916 = vmatpush2.bf16.xpose.msra.mxu0 0
  %917 = vmatprep.subr.bf16.mxu0 0
  %918 = vmatpush2.bf16.xpose.msra.mxu0 0
  %919 = vmatprep.subr.bf16.mxu0 0
  %920 = vmatpush2.bf16.xpose.msra.mxu0 0
  %921 = vmatprep.subr.bf16.mxu0 0
  %922 = vmatpush2.bf16.xpose.msra.mxu0 0
  %923 = vmatprep.subr.bf16.mxu0 0
  %924 = vmatpush2.bf16.xpose.msra.mxu0 0
  %925 = vmatprep.subr.bf16.mxu0 0
  %926 = vmatpush2.bf16.xpose.msra.mxu0 0
  %927 = vmatprep.mubr.bf16.mxu0 0
  %928 = vmatmul.mubr.bf16.gmra.mxu0 %v890
  %v929 = vpop.f32.mrf.mxu0
  %v930 = vadd.f32 %v764, %v929
  %v931 = vpop.f32.mrf.mxu0
  %v932 = vpop.f32.mrf.mxu0
  %v933 = vadd.f32 %v764, %v932
  %v934 = vpop.f32.mrf.mxu0
  %935 = vdwg.mxu0
  %v936 = vsel %vm293, %v930, -inf
  %937 = vmax.xlane.f32.xlu0 %v936
  %v938 = vpop.xlane.xlu0 %937
  %v939 = vsel %vm293, %v933, -inf
  %940 = vmax.xlane.f32.xlu0 %v939
  %v941 = vpop.xlane.xlu0 %940
  %v942 = vsub.f32 %v930, %v938
  %v943 = vsub.f32 %v933, %v941
  %v944 = vmul.f32 %v942, 1.442695
  %v945 = vpow.pop %v944
  %v946 = vmul.f32 %v943, 1.442695
  %v947 = vpow.pop %v946
  %v948 = vsel %vm293, %v945, 0.0
  %949 = vadd.xlane.f32.xlu0 %v948
  %v950 = vpop.xlane.xlu0 %949
  %v951 = vsel %vm293, %v947, 0.0
  %952 = vadd.xlane.f32.xlu0 %v951
  %v953 = vpop.xlane.xlu0 %952
  %v954 = vpack.c.bf16 %v947, %v945
  %956 = vrot.lane.b32.xlu0 %v233, 120
  %v957 = vpop.permute.xlu0 %956
  %v960 = vsel %vm293, %v954, 0
  %962 = vmatprep.subr.bf16.mxu0 0
  %963 = vmatpush1.bf16.msra.mxu0 0
  %964 = vmatprep.subr.bf16.mxu0 0
  %965 = vmatpush1.bf16.msra.mxu0 0
  %966 = vmatprep.subr.bf16.mxu0 0
  %967 = vmatpush1.bf16.msra.mxu0 0
  %968 = vmatprep.subr.bf16.mxu0 0
  %969 = vmatpush1.bf16.msra.mxu0 0
  %970 = vmatprep.subr.bf16.mxu0 0
  %971 = vmatpush1.bf16.msra.mxu0 0
  %972 = vmatprep.subr.bf16.mxu0 0
  %973 = vmatpush1.bf16.msra.mxu0 0
  %974 = vmatprep.subr.bf16.mxu0 0
  %975 = vmatpush1.bf16.msra.mxu0 0
  %976 = vmatprep.subr.bf16.mxu0 0
  %977 = vmatpush1.bf16.msra.mxu0 %v957
  %978 = vmatprep.subr.bf16.mxu0 0
  %979 = vmatpush2.bf16.msra.mxu0 0
  %980 = vmatprep.subr.bf16.mxu0 0
  %981 = vmatpush2.bf16.msra.mxu0 0
  %982 = vmatprep.subr.bf16.mxu0 0
  %983 = vmatpush2.bf16.msra.mxu0 0
  %984 = vmatprep.subr.bf16.mxu0 0
  %985 = vmatpush2.bf16.msra.mxu0 0
  %986 = vmatprep.subr.bf16.mxu0 0
  %987 = vmatpush2.bf16.msra.mxu0 0
  %988 = vmatprep.subr.bf16.mxu0 0
  %989 = vmatpush2.bf16.msra.mxu0 0
  %990 = vmatprep.subr.bf16.mxu0 0
  %991 = vmatpush2.bf16.msra.mxu0 0
  %992 = vmatprep.subr.bf16.mxu0 0
  %993 = vmatpush2.bf16.msra.mxu0 0
  %994 = vmatprep.mubr.bf16.mxu0 0
  %995 = vmatmul.mubr.bf16.gmra.mxu0 %v960
  %v996 = vpop.f32.mrf.mxu0
  %v997 = vadd.f32 0.0, %v996
  %v998 = vpop.f32.mrf.mxu0
  %v999 = vpop.f32.mrf.mxu0
  %v1000 = vadd.f32 0.0, %v999
  %v1001 = vpop.f32.mrf.mxu0
  %1002 = vdwg.mxu0
  %v1003 = vrcp.pop %v950
  %v1004 = vrcp.pop %v953
  %v1005 = vmul.f32 %v997, %v1003
  %v1006 = vmul.f32 %v1000, %v1004
  %1009 = vrot.lane.b32.xlu0 %v1005, 8
  %v1010 = vpop.permute.xlu0 %1009
  %1011 = vrot.lane.b32.xlu0 %v1006, 8
  %v1012 = vpop.permute.xlu0 %1011
  %1015 = vst.msk [vmem:[#allocation2 + $0x10] sm:$0xff] %vm493, %v1010
  %1016 = vst.msk [vmem:[#allocation2 + $0x18] sm:$0xff] %vm493, %v1012
  %1017 = vrot.lane.b32.xlu0 %v231, 112
  %v1018 = vpop.permute.xlu0 %1017
  %1019 = vrot.lane.b32.xlu0 %v231, 80
  %v1020 = vpop.permute.xlu0 %1019
  %v1022 = vsel %vm245, %v1018, 0
  %v1025 = vsel %vm245, %v1020, 0
  %1027 = vmatprep.subr.bf16.mxu0 0
  %1028 = vmatpush1.bf16.xpose.msra.mxu0 0
  %1029 = vmatprep.subr.bf16.mxu0 0
  %1030 = vmatpush1.bf16.xpose.msra.mxu0 0
  %1031 = vmatprep.subr.bf16.mxu0 0
  %1032 = vmatpush1.bf16.xpose.msra.mxu0 0
  %1033 = vmatprep.subr.bf16.mxu0 0
  %1034 = vmatpush1.bf16.xpose.msra.mxu0 0
  %1035 = vmatprep.subr.bf16.mxu0 0
  %1036 = vmatpush1.bf16.xpose.msra.mxu0 0
  %1037 = vmatprep.subr.bf16.mxu0 0
  %1038 = vmatpush1.bf16.xpose.msra.mxu0 0
  %1039 = vmatprep.subr.bf16.mxu0 0
  %1040 = vmatpush1.bf16.xpose.msra.mxu0 0
  %1041 = vmatprep.subr.bf16.mxu0 0
  %1042 = vmatpush1.bf16.xpose.msra.mxu0 %v1025
  %1043 = vmatprep.subr.bf16.mxu0 0
  %1044 = vmatpush2.bf16.xpose.msra.mxu0 0
  %1045 = vmatprep.subr.bf16.mxu0 0
  %1046 = vmatpush2.bf16.xpose.msra.mxu0 0
  %1047 = vmatprep.subr.bf16.mxu0 0
  %1048 = vmatpush2.bf16.xpose.msra.mxu0 0
  %1049 = vmatprep.subr.bf16.mxu0 0
  %1050 = vmatpush2.bf16.xpose.msra.mxu0 0
  %1051 = vmatprep.subr.bf16.mxu0 0
  %1052 = vmatpush2.bf16.xpose.msra.mxu0 0
  %1053 = vmatprep.subr.bf16.mxu0 0
  %1054 = vmatpush2.bf16.xpose.msra.mxu0 0
  %1055 = vmatprep.subr.bf16.mxu0 0
  %1056 = vmatpush2.bf16.xpose.msra.mxu0 0
  %1057 = vmatprep.subr.bf16.mxu0 0
  %1058 = vmatpush2.bf16.xpose.msra.mxu0 0
  %1059 = vmatprep.mubr.bf16.mxu0 0
  %1060 = vmatmul.mubr.bf16.gmra.mxu0 %v1022
  %v1061 = vpop.f32.mrf.mxu0
  %v1062 = vadd.f32 %v764, %v1061
  %v1063 = vpop.f32.mrf.mxu0
  %v1064 = vpop.f32.mrf.mxu0
  %v1065 = vadd.f32 %v764, %v1064
  %v1066 = vpop.f32.mrf.mxu0
  %1067 = vdwg.mxu0
  %v1068 = vsel %vm293, %v1062, -inf
  %1069 = vmax.xlane.f32.xlu0 %v1068
  %v1070 = vpop.xlane.xlu0 %1069
  %v1071 = vsel %vm293, %v1065, -inf
  %1072 = vmax.xlane.f32.xlu0 %v1071
  %v1073 = vpop.xlane.xlu0 %1072
  %v1074 = vsub.f32 %v1062, %v1070
  %v1075 = vsub.f32 %v1065, %v1073
  %v1076 = vmul.f32 %v1074, 1.442695
  %v1077 = vpow.pop %v1076
  %v1078 = vmul.f32 %v1075, 1.442695
  %v1079 = vpow.pop %v1078
  %v1080 = vsel %vm293, %v1077, 0.0
  %1081 = vadd.xlane.f32.xlu0 %v1080
  %v1082 = vpop.xlane.xlu0 %1081
  %v1083 = vsel %vm293, %v1079, 0.0
  %1084 = vadd.xlane.f32.xlu0 %v1083
  %v1085 = vpop.xlane.xlu0 %1084
  %v1086 = vpack.c.bf16 %v1079, %v1077
  %1087 = vrot.lane.b32.xlu0 %v233, 112
  %v1088 = vpop.permute.xlu0 %1087
  %v1091 = vsel %vm293, %v1086, 0
  %1093 = vmatprep.subr.bf16.mxu0 0
  %1094 = vmatpush1.bf16.msra.mxu0 0
  %1095 = vmatprep.subr.bf16.mxu0 0
  %1096 = vmatpush1.bf16.msra.mxu0 0
  %1097 = vmatprep.subr.bf16.mxu0 0
  %1098 = vmatpush1.bf16.msra.mxu0 0
  %1099 = vmatprep.subr.bf16.mxu0 0
  %1100 = vmatpush1.bf16.msra.mxu0 0
  %1101 = vmatprep.subr.bf16.mxu0 0
  %1102 = vmatpush1.bf16.msra.mxu0 0
  %1103 = vmatprep.subr.bf16.mxu0 0
  %1104 = vmatpush1.bf16.msra.mxu0 0
  %1105 = vmatprep.subr.bf16.mxu0 0
  %1106 = vmatpush1.bf16.msra.mxu0 0
  %1107 = vmatprep.subr.bf16.mxu0 0
  %1108 = vmatpush1.bf16.msra.mxu0 %v1088
  %1109 = vmatprep.subr.bf16.mxu0 0
  %1110 = vmatpush2.bf16.msra.mxu0 0
  %1111 = vmatprep.subr.bf16.mxu0 0
  %1112 = vmatpush2.bf16.msra.mxu0 0
  %1113 = vmatprep.subr.bf16.mxu0 0
  %1114 = vmatpush2.bf16.msra.mxu0 0
  %1115 = vmatprep.subr.bf16.mxu0 0
  %1116 = vmatpush2.bf16.msra.mxu0 0
  %1117 = vmatprep.subr.bf16.mxu0 0
  %1118 = vmatpush2.bf16.msra.mxu0 0
  %1119 = vmatprep.subr.bf16.mxu0 0
  %1120 = vmatpush2.bf16.msra.mxu0 0
  %1121 = vmatprep.subr.bf16.mxu0 0
  %1122 = vmatpush2.bf16.msra.mxu0 0
  %1123 = vmatprep.subr.bf16.mxu0 0
  %1124 = vmatpush2.bf16.msra.mxu0 0
  %1125 = vmatprep.mubr.bf16.mxu0 0
  %1126 = vmatmul.mubr.bf16.gmra.mxu0 %v1091
  %v1127 = vpop.f32.mrf.mxu0
  %v1128 = vadd.f32 0.0, %v1127
  %v1129 = vpop.f32.mrf.mxu0
  %v1130 = vpop.f32.mrf.mxu0
  %v1131 = vadd.f32 0.0, %v1130
  %v1132 = vpop.f32.mrf.mxu0
  %1133 = vdwg.mxu0
  %v1134 = vrcp.pop %v1082
  %v1135 = vrcp.pop %v1085
  %v1136 = vmul.f32 %v1128, %v1134
  %v1137 = vmul.f32 %v1131, %v1135
  %1140 = vrot.lane.b32.xlu0 %v1136, 16
  %v1141 = vpop.permute.xlu0 %1140
  %1142 = vrot.lane.b32.xlu0 %v1137, 16
  %v1143 = vpop.permute.xlu0 %1142
  %1146 = vst.msk [vmem:[#allocation2 + $0x10] sm:$0xff] %vm625, %v1141
  %1147 = vst.msk [vmem:[#allocation2 + $0x18] sm:$0xff] %vm625, %v1143
  %1148 = vrot.lane.b32.xlu0 %v231, 104
  %v1149 = vpop.permute.xlu0 %1148
  %1150 = vrot.lane.b32.xlu0 %v231, 72
  %v1151 = vpop.permute.xlu0 %1150
  %v1153 = vsel %vm245, %v1149, 0
  %v1156 = vsel %vm245, %v1151, 0
  %1158 = vmatprep.subr.bf16.mxu0 0
  %1159 = vmatpush1.bf16.xpose.msra.mxu0 0
  %1160 = vmatprep.subr.bf16.mxu0 0
  %1161 = vmatpush1.bf16.xpose.msra.mxu0 0
  %1162 = vmatprep.subr.bf16.mxu0 0
  %1163 = vmatpush1.bf16.xpose.msra.mxu0 0
  %1164 = vmatprep.subr.bf16.mxu0 0
  %1165 = vmatpush1.bf16.xpose.msra.mxu0 0
  %1166 = vmatprep.subr.bf16.mxu0 0
  %1167 = vmatpush1.bf16.xpose.msra.mxu0 0
  %1168 = vmatprep.subr.bf16.mxu0 0
  %1169 = vmatpush1.bf16.xpose.msra.mxu0 0
  %1170 = vmatprep.subr.bf16.mxu0 0
  %1171 = vmatpush1.bf16.xpose.msra.mxu0 0
  %1172 = vmatprep.subr.bf16.mxu0 0
  %1173 = vmatpush1.bf16.xpose.msra.mxu0 %v1156
  %1174 = vmatprep.subr.bf16.mxu0 0
  %1175 = vmatpush2.bf16.xpose.msra.mxu0 0
  %1176 = vmatprep.subr.bf16.mxu0 0
  %1177 = vmatpush2.bf16.xpose.msra.mxu0 0
  %1178 = vmatprep.subr.bf16.mxu0 0
  %1179 = vmatpush2.bf16.xpose.msra.mxu0 0
  %1180 = vmatprep.subr.bf16.mxu0 0
  %1181 = vmatpush2.bf16.xpose.msra.mxu0 0
  %1182 = vmatprep.subr.bf16.mxu0 0
  %1183 = vmatpush2.bf16.xpose.msra.mxu0 0
  %1184 = vmatprep.subr.bf16.mxu0 0
  %1185 = vmatpush2.bf16.xpose.msra.mxu0 0
  %1186 = vmatprep.subr.bf16.mxu0 0
  %1187 = vmatpush2.bf16.xpose.msra.mxu0 0
  %1188 = vmatprep.subr.bf16.mxu0 0
  %1189 = vmatpush2.bf16.xpose.msra.mxu0 0
  %1190 = vmatprep.mubr.bf16.mxu0 0
  %1191 = vmatmul.mubr.bf16.gmra.mxu0 %v1153
  %v1192 = vpop.f32.mrf.mxu0
  %v1193 = vadd.f32 %v764, %v1192
  %v1194 = vpop.f32.mrf.mxu0
  %v1195 = vpop.f32.mrf.mxu0
  %v1196 = vadd.f32 %v764, %v1195
  %v1197 = vpop.f32.mrf.mxu0
  %1198 = vdwg.mxu0
  %v1199 = vsel %vm293, %v1193, -inf
  %1200 = vmax.xlane.f32.xlu0 %v1199
  %v1201 = vpop.xlane.xlu0 %1200
  %v1202 = vsel %vm293, %v1196, -inf
  %1203 = vmax.xlane.f32.xlu0 %v1202
  %v1204 = vpop.xlane.xlu0 %1203
  %v1205 = vsub.f32 %v1193, %v1201
  %v1206 = vsub.f32 %v1196, %v1204
  %v1207 = vmul.f32 %v1205, 1.442695
  %v1208 = vpow.pop %v1207
  %v1209 = vmul.f32 %v1206, 1.442695
  %v1210 = vpow.pop %v1209
  %v1211 = vsel %vm293, %v1208, 0.0
  %1212 = vadd.xlane.f32.xlu0 %v1211
  %v1213 = vpop.xlane.xlu0 %1212
  %v1214 = vsel %vm293, %v1210, 0.0
  %1215 = vadd.xlane.f32.xlu0 %v1214
  %v1216 = vpop.xlane.xlu0 %1215
  %v1217 = vpack.c.bf16 %v1210, %v1208
  %1218 = vrot.lane.b32.xlu0 %v233, 104
  %v1219 = vpop.permute.xlu0 %1218
  %v1222 = vsel %vm293, %v1217, 0
  %1224 = vmatprep.subr.bf16.mxu0 0
  %1225 = vmatpush1.bf16.msra.mxu0 0
  %1226 = vmatprep.subr.bf16.mxu0 0
  %1227 = vmatpush1.bf16.msra.mxu0 0
  %1228 = vmatprep.subr.bf16.mxu0 0
  %1229 = vmatpush1.bf16.msra.mxu0 0
  %1230 = vmatprep.subr.bf16.mxu0 0
  %1231 = vmatpush1.bf16.msra.mxu0 0
  %1232 = vmatprep.subr.bf16.mxu0 0
  %1233 = vmatpush1.bf16.msra.mxu0 0
  %1234 = vmatprep.subr.bf16.mxu0 0
  %1235 = vmatpush1.bf16.msra.mxu0 0
  %1236 = vmatprep.subr.bf16.mxu0 0
  %1237 = vmatpush1.bf16.msra.mxu0 0
  %1238 = vmatprep.subr.bf16.mxu0 0
  %1239 = vmatpush1.bf16.msra.mxu0 %v1219
  %1240 = vmatprep.subr.bf16.mxu0 0
  %1241 = vmatpush2.bf16.msra.mxu0 0
  %1242 = vmatprep.subr.bf16.mxu0 0
  %1243 = vmatpush2.bf16.msra.mxu0 0
  %1244 = vmatprep.subr.bf16.mxu0 0
  %1245 = vmatpush2.bf16.msra.mxu0 0
  %1246 = vmatprep.subr.bf16.mxu0 0
  %1247 = vmatpush2.bf16.msra.mxu0 0
  %1248 = vmatprep.subr.bf16.mxu0 0
  %1249 = vmatpush2.bf16.msra.mxu0 0
  %1250 = vmatprep.subr.bf16.mxu0 0
  %1251 = vmatpush2.bf16.msra.mxu0 0
  %1252 = vmatprep.subr.bf16.mxu0 0
  %1253 = vmatpush2.bf16.msra.mxu0 0
  %1254 = vmatprep.subr.bf16.mxu0 0
  %1255 = vmatpush2.bf16.msra.mxu0 0
  %1256 = vmatprep.mubr.bf16.mxu0 0
  %1257 = vmatmul.mubr.bf16.gmra.mxu0 %v1222
  %v1258 = vpop.f32.mrf.mxu0
  %v1259 = vadd.f32 0.0, %v1258
  %v1260 = vpop.f32.mrf.mxu0
  %v1261 = vpop.f32.mrf.mxu0
  %v1262 = vadd.f32 0.0, %v1261
  %v1263 = vpop.f32.mrf.mxu0
  %1264 = vdwg.mxu0
  %v1265 = vrcp.pop %v1213
  %v1266 = vrcp.pop %v1216
  %v1267 = vmul.f32 %v1259, %v1265
  %v1268 = vmul.f32 %v1262, %v1266
  %1271 = vrot.lane.b32.xlu0 %v1267, 24
  %v1272 = vpop.permute.xlu0 %1271
  %1273 = vrot.lane.b32.xlu0 %v1268, 24
  %v1274 = vpop.permute.xlu0 %1273
  %1277 = vst.msk [vmem:[#allocation2 + $0x10] sm:$0xff] %vm757, %v1272
  %1278 = vst.msk [vmem:[#allocation2 + $0x18] sm:$0xff] %vm757, %v1274
  %v1279 = vld [vmem:[#allocation2] sm:$0xff]
  %v1280 = vld [vmem:[#allocation2 + $0x8] sm:$0xff]
  %v1281 = vld [vmem:[#allocation2 + $0x10] sm:$0xff]
  %v1282 = vld [vmem:[#allocation2 + $0x18] sm:$0xff]
  %v1283 = vpack.c.bf16 %v1280, %v1279
  %v1284 = vpack.c.bf16 %v1282, %v1281
  %v1285 = vld [vmem:[%s7] sm:$0xf]
  %v1286 = vld [vmem:[%s7 + $0x4] sm:$0xf]
  %v1287 = vld [vmem:[%s7 + $0x8] sm:$0xf]
  %v1288 = vld [vmem:[%s7 + $0xc] sm:$0xf]
  %v1289 = vld [vmem:[%s8] sm:$0x1]
  %v1291 = vlaneseq
  %v1292 = vshrl.u32 %v1291, 7
  %v1293 = vsub.s32 0, %v1292
  %v1294 = vrot.slane %v1289, %v1293
  %v1300 = vunpack.c.l.b16 %v1285
  %v1301 = vunpack.c.l.b16 %v1286
  %v1302 = vunpack.c.l.b16 %v1287
  %v1303 = vunpack.c.l.b16 %v1288
  %v1304 = vpack.c.b16 %v1301, %v1300
  %v1305 = vpack.c.b16 %v1303, %v1302
  %v1309 = vsel %vm94, %v1283, 0
  %v1312 = vsel %vm94, %v1284, 0
  %1314 = vmatprep.subr.bf16.mxu0 0
  %1315 = vmatpush1.bf16.msra.mxu0 0
  %1316 = vmatprep.subr.bf16.mxu0 0
  %1317 = vmatpush1.bf16.msra.mxu0 0
  %1318 = vmatprep.subr.bf16.mxu0 0
  %1319 = vmatpush1.bf16.msra.mxu0 0
  %1320 = vmatprep.subr.bf16.mxu0 0
  %1321 = vmatpush1.bf16.msra.mxu0 0
  %1322 = vmatprep.subr.bf16.mxu0 0
  %1323 = vmatpush1.bf16.msra.mxu0 0
  %1324 = vmatprep.subr.bf16.mxu0 0
  %1325 = vmatpush1.bf16.msra.mxu0 0
  %1326 = vmatprep.subr.bf16.mxu0 0
  %1327 = vmatpush1.bf16.msra.mxu0 %v1305
  %1328 = vmatprep.subr.bf16.mxu0 0
  %1329 = vmatpush1.bf16.msra.mxu0 %v1304
  %1330 = vmatprep.subr.bf16.mxu0 0
  %1331 = vmatpush2.bf16.msra.mxu0 0
  %1332 = vmatprep.subr.bf16.mxu0 0
  %1333 = vmatpush2.bf16.msra.mxu0 0
  %1334 = vmatprep.subr.bf16.mxu0 0
  %1335 = vmatpush2.bf16.msra.mxu0 0
  %1336 = vmatprep.subr.bf16.mxu0 0
  %1337 = vmatpush2.bf16.msra.mxu0 0
  %1338 = vmatprep.subr.bf16.mxu0 0
  %1339 = vmatpush2.bf16.msra.mxu0 0
  %1340 = vmatprep.subr.bf16.mxu0 0
  %1341 = vmatpush2.bf16.msra.mxu0 0
  %1342 = vmatprep.subr.bf16.mxu0 0
  %1343 = vmatpush2.bf16.msra.mxu0 0
  %1344 = vmatprep.subr.bf16.mxu0 0
  %1345 = vmatpush2.bf16.msra.mxu0 0
  %1346 = vmatprep.mubr.bf16.mxu0 0
  %1347 = vmatmul.mubr.bf16.gmra.mxu0 %v1309
  %v1348 = vpop.f32.mrf.mxu0
  %v1349 = vadd.f32 %v1294, %v1348
  %v1350 = vpop.f32.mrf.mxu0
  %v1351 = vpop.f32.mrf.mxu0
  %v1352 = vadd.f32 %v1294, %v1351
  %v1353 = vpop.f32.mrf.mxu0
  %1354 = vmatprep.mubr.bf16.mxu0 0
  %1355 = vmatmul.mubr.bf16.gmra.mxu0 %v1312
  %v1356 = vpop.f32.mrf.mxu0
  %v1357 = vadd.f32 %v1294, %v1356
  %v1358 = vpop.f32.mrf.mxu0
  %v1359 = vpop.f32.mrf.mxu0
  %v1360 = vadd.f32 %v1294, %v1359
  %v1361 = vpop.f32.mrf.mxu0
  %1362 = vdwg.mxu0
  %v1363 = vadd.f32 %v57, %v1349
  %v1364 = vadd.f32 %v58, %v1352
  %v1365 = vadd.f32 %v59, %v1357
  %v1366 = vadd.f32 %v60, %v1360
  %v1367 = vld [vmem:[%s9] sm:$0x1]
  %v1368 = vld [vmem:[%s10] sm:$0x1]
  %v1369 = vsel %vm94, %v1363, 0.0
  %1370 = vadd.xlane.f32.xlu0 %v1369
  %v1371 = vpop.xlane.xlu0 %1370
  %v1372 = vsel %vm94, %v1364, 0.0
  %1373 = vadd.xlane.f32.xlu0 %v1372
  %v1374 = vpop.xlane.xlu0 %1373
  %v1375 = vsel %vm94, %v1365, 0.0
  %1376 = vadd.xlane.f32.xlu0 %v1375
  %v1377 = vpop.xlane.xlu0 %1376
  %v1378 = vsel %vm94, %v1366, 0.0
  %1379 = vadd.xlane.f32.xlu0 %v1378
  %v1380 = vpop.xlane.xlu0 %1379
  %v1381 = vrcp.pop 32.0
  %v1382 = vmul.f32 %v1371, %v1381
  %v1383 = vmul.f32 %v1374, %v1381
  %v1384 = vmul.f32 %v1377, %v1381
  %v1385 = vmul.f32 %v1380, %v1381
  %v1386 = vsub.f32 %v1363, %v1382
  %v1387 = vsub.f32 %v1364, %v1383
  %v1388 = vsub.f32 %v1365, %v1384
  %v1389 = vsub.f32 %v1366, %v1385
  %v1390 = vmul.f32 %v1386, %v1386
  %v1391 = vmul.f32 %v1387, %v1387
  %v1392 = vmul.f32 %v1388, %v1388
  %v1393 = vmul.f32 %v1389, %v1389
  %v1394 = vsel %vm94, %v1390, 0.0
  %1395 = vadd.xlane.f32.xlu0 %v1394
  %v1396 = vpop.xlane.xlu0 %1395
  %v1397 = vsel %vm94, %v1391, 0.0
  %1398 = vadd.xlane.f32.xlu0 %v1397
  %v1399 = vpop.xlane.xlu0 %1398
  %v1400 = vsel %vm94, %v1392, 0.0
  %1401 = vadd.xlane.f32.xlu0 %v1400
  %v1402 = vpop.xlane.xlu0 %1401
  %v1403 = vsel %vm94, %v1393, 0.0
  %1404 = vadd.xlane.f32.xlu0 %v1403
  %v1405 = vpop.xlane.xlu0 %1404
  %v1406 = vmul.f32 %v1396, %v1381
  %v1407 = vmul.f32 %v1399, %v1381
  %v1408 = vmul.f32 %v1402, %v1381
  %v1409 = vmul.f32 %v1405, %v1381
  %v1410 = vadd.f32 %v1406, 1e-05
  %v1411 = vadd.f32 %v1407, 1e-05
  %v1412 = vadd.f32 %v1408, 1e-05
  %v1413 = vadd.f32 %v1409, 1e-05
  %v1414 = vrsqrt.pop %v1410
  %v1415 = vrsqrt.pop %v1411
  %v1416 = vrsqrt.pop %v1412
  %v1417 = vrsqrt.pop %v1413
  %v1418 = vmul.f32 %v1386, %v1414
  %v1419 = vmul.f32 %v1387, %v1415
  %v1420 = vmul.f32 %v1388, %v1416
  %v1421 = vmul.f32 %v1389, %v1417
  %v1423 = vlaneseq
  %v1424 = vshrl.u32 %v1423, 7
  %v1425 = vsub.s32 0, %v1424
  %v1426 = vrot.slane %v1367, %v1425
  %v1428 = vmul.f32 %v1418, %v1426
  %v1429 = vmul.f32 %v1419, %v1426
  %v1430 = vmul.f32 %v1420, %v1426
  %v1431 = vmul.f32 %v1421, %v1426
  %v1433 = vlaneseq
  %v1434 = vshrl.u32 %v1433, 7
  %v1435 = vsub.s32 0, %v1434
  %v1436 = vrot.slane %v1368, %v1435
  %v1438 = vadd.f32 %v1428, %v1436
  %v1439 = vadd.f32 %v1429, %v1436
  %v1440 = vadd.f32 %v1430, %v1436
  %v1441 = vadd.f32 %v1431, %v1436
  %v1442 = vpack.c.bf16 %v1439, %v1438
  %v1443 = vpack.c.bf16 %v1441, %v1440
  %v1444 = vld [vmem:[%s11] sm:$0xf]
  %v1445 = vld [vmem:[%s11 + $0x4] sm:$0xf]
  %v1446 = vld [vmem:[%s11 + $0x8] sm:$0xf]
  %v1447 = vld [vmem:[%s11 + $0xc] sm:$0xf]
  %v1448 = vld [vmem:[%s12] sm:$0x1]
  %v1450 = vlaneseq
  %v1451 = vshrl.u32 %v1450, 7
  %v1452 = vsub.s32 0, %v1451
  %v1453 = vrot.slane %v1448, %v1452
  %v1459 = vunpack.c.l.b16 %v1444
  %v1460 = vunpack.c.l.b16 %v1445
  %v1461 = vunpack.c.l.b16 %v1446
  %v1462 = vunpack.c.l.b16 %v1447
  %v1463 = vpack.c.b16 %v1460, %v1459
  %v1464 = vpack.c.b16 %v1462, %v1461
  %v1468 = vsel %vm94, %v1442, 0
  %v1471 = vsel %vm94, %v1443, 0
  %1473 = vmatprep.subr.bf16.mxu0 0
  %1474 = vmatpush1.bf16.msra.mxu0 0
  %1475 = vmatprep.subr.bf16.mxu0 0
  %1476 = vmatpush1.bf16.msra.mxu0 0
  %1477 = vmatprep.subr.bf16.mxu0 0
  %1478 = vmatpush1.bf16.msra.mxu0 0
  %1479 = vmatprep.subr.bf16.mxu0 0
  %1480 = vmatpush1.bf16.msra.mxu0 0
  %1481 = vmatprep.subr.bf16.mxu0 0
  %1482 = vmatpush1.bf16.msra.mxu0 0
  %1483 = vmatprep.subr.bf16.mxu0 0
  %1484 = vmatpush1.bf16.msra.mxu0 0
  %1485 = vmatprep.subr.bf16.mxu0 0
  %1486 = vmatpush1.bf16.msra.mxu0 %v1464
  %1487 = vmatprep.subr.bf16.mxu0 0
  %1488 = vmatpush1.bf16.msra.mxu0 %v1463
  %1489 = vmatprep.subr.bf16.mxu0 0
  %1490 = vmatpush2.bf16.msra.mxu0 0
  %1491 = vmatprep.subr.bf16.mxu0 0
  %1492 = vmatpush2.bf16.msra.mxu0 0
  %1493 = vmatprep.subr.bf16.mxu0 0
  %1494 = vmatpush2.bf16.msra.mxu0 0
  %1495 = vmatprep.subr.bf16.mxu0 0
  %1496 = vmatpush2.bf16.msra.mxu0 0
  %1497 = vmatprep.subr.bf16.mxu0 0
  %1498 = vmatpush2.bf16.msra.mxu0 0
  %1499 = vmatprep.subr.bf16.mxu0 0
  %1500 = vmatpush2.bf16.msra.mxu0 0
  %1501 = vmatprep.subr.bf16.mxu0 0
  %1502 = vmatpush2.bf16.msra.mxu0 0
  %1503 = vmatprep.subr.bf16.mxu0 0
  %1504 = vmatpush2.bf16.msra.mxu0 0
  %1505 = vmatprep.mubr.bf16.mxu0 0
  %1506 = vmatmul.mubr.bf16.gmra.mxu0 %v1468
  %v1507 = vpop.f32.mrf.mxu0
  %v1508 = vadd.f32 %v1453, %v1507
  %v1509 = vpop.f32.mrf.mxu0
  %v1510 = vpop.f32.mrf.mxu0
  %v1511 = vadd.f32 %v1453, %v1510
  %v1512 = vpop.f32.mrf.mxu0
  %1513 = vmatprep.mubr.bf16.mxu0 0
  %1514 = vmatmul.mubr.bf16.gmra.mxu0 %v1471
  %v1515 = vpop.f32.mrf.mxu0
  %v1516 = vadd.f32 %v1453, %v1515
  %v1517 = vpop.f32.mrf.mxu0
  %v1518 = vpop.f32.mrf.mxu0
  %v1519 = vadd.f32 %v1453, %v1518
  %v1520 = vpop.f32.mrf.mxu0
  %1521 = vdwg.mxu0
  %v1522 = vmax.f32 %v1508, 0.0
  %v1523 = vmax.f32 %v1511, 0.0
  %v1524 = vmax.f32 %v1516, 0.0
  %v1525 = vmax.f32 %v1519, 0.0
  %v1526 = vpack.c.bf16 %v1523, %v1522
  %v1527 = vpack.c.bf16 %v1525, %v1524
  %v1528 = vld [vmem:[%s13] sm:$0xf]
  %v1529 = vld [vmem:[%s13 + $0x4] sm:$0xf]
  %v1530 = vld [vmem:[%s13 + $0x8] sm:$0xf]
  %v1531 = vld [vmem:[%s13 + $0xc] sm:$0xf]
  %v1532 = vld [vmem:[%s13 + $0x10] sm:$0xf]
  %v1533 = vld [vmem:[%s13 + $0x14] sm:$0xf]
  %v1534 = vld [vmem:[%s13 + $0x18] sm:$0xf]
  %v1535 = vld [vmem:[%s13 + $0x1c] sm:$0xf]
  %v1536 = vld [vmem:[%s14] sm:$0x1]
  %v1538 = vlaneseq
  %v1539 = vshrl.u32 %v1538, 7
  %v1540 = vsub.s32 0, %v1539
  %v1541 = vrot.slane %v1536, %v1540
  %v1551 = vunpack.c.l.b16 %v1528
  %v1552 = vunpack.c.l.b16 %v1529
  %v1553 = vunpack.c.l.b16 %v1530
  %v1554 = vunpack.c.l.b16 %v1531
  %v1555 = vunpack.c.l.b16 %v1532
  %v1556 = vunpack.c.l.b16 %v1533
  %v1557 = vunpack.c.l.b16 %v1534
  %v1558 = vunpack.c.l.b16 %v1535
  %v1559 = vpack.c.b16 %v1552, %v1551
  %v1560 = vpack.c.b16 %v1554, %v1553
  %v1561 = vpack.c.b16 %v1556, %v1555
  %v1562 = vpack.c.b16 %v1558, %v1557
  %vm1567 = vcmask 523264
  %v1569 = vsel %vm1567, %v1526, 0
  %v1572 = vsel %vm1567, %v1527, 0
  %1574 = vmatprep.subr.bf16.mxu0 0
  %1575 = vmatpush1.bf16.msra.mxu0 0
  %1576 = vmatprep.subr.bf16.mxu0 0
  %1577 = vmatpush1.bf16.msra.mxu0 0
  %1578 = vmatprep.subr.bf16.mxu0 0
  %1579 = vmatpush1.bf16.msra.mxu0 0
  %1580 = vmatprep.subr.bf16.mxu0 0
  %1581 = vmatpush1.bf16.msra.mxu0 0
  %1582 = vmatprep.subr.bf16.mxu0 0
  %1583 = vmatpush1.bf16.msra.mxu0 %v1562
  %1584 = vmatprep.subr.bf16.mxu0 0
  %1585 = vmatpush1.bf16.msra.mxu0 %v1561
  %1586 = vmatprep.subr.bf16.mxu0 0
  %1587 = vmatpush1.bf16.msra.mxu0 %v1560
  %1588 = vmatprep.subr.bf16.mxu0 0
  %1589 = vmatpush1.bf16.msra.mxu0 %v1559
  %1590 = vmatprep.subr.bf16.mxu0 0
  %1591 = vmatpush2.bf16.msra.mxu0 0
  %1592 = vmatprep.subr.bf16.mxu0 0
  %1593 = vmatpush2.bf16.msra.mxu0 0
  %1594 = vmatprep.subr.bf16.mxu0 0
  %1595 = vmatpush2.bf16.msra.mxu0 0
  %1596 = vmatprep.subr.bf16.mxu0 0
  %1597 = vmatpush2.bf16.msra.mxu0 0
  %1598 = vmatprep.subr.bf16.mxu0 0
  %1599 = vmatpush2.bf16.msra.mxu0 0
  %1600 = vmatprep.subr.bf16.mxu0 0
  %1601 = vmatpush2.bf16.msra.mxu0 0
  %1602 = vmatprep.subr.bf16.mxu0 0
  %1603 = vmatpush2.bf16.msra.mxu0 0
  %1604 = vmatprep.subr.bf16.mxu0 0
  %1605 = vmatpush2.bf16.msra.mxu0 0
  %1606 = vmatprep.mubr.bf16.mxu0 0
  %1607 = vmatmul.mubr.bf16.gmra.mxu0 %v1569
  %v1608 = vpop.f32.mrf.mxu0
  %v1609 = vadd.f32 %v1541, %v1608
  %v1610 = vpop.f32.mrf.mxu0
  %v1611 = vpop.f32.mrf.mxu0
  %v1612 = vadd.f32 %v1541, %v1611
  %v1613 = vpop.f32.mrf.mxu0
  %1614 = vmatprep.mubr.bf16.mxu0 0
  %1615 = vmatmul.mubr.bf16.gmra.mxu0 %v1572
  %v1616 = vpop.f32.mrf.mxu0
  %v1617 = vadd.f32 %v1541, %v1616
  %v1618 = vpop.f32.mrf.mxu0
  %v1619 = vpop.f32.mrf.mxu0
  %v1620 = vadd.f32 %v1541, %v1619
  %v1621 = vpop.f32.mrf.mxu0
  %1622 = vdwg.mxu0
  %v1623 = vadd.f32 %v1438, %v1609
  %v1624 = vadd.f32 %v1439, %v1612
  %v1625 = vadd.f32 %v1440, %v1617
  %v1626 = vadd.f32 %v1441, %v1620
  %v1627 = vld [vmem:[%s15] sm:$0x1]
  %v1628 = vld [vmem:[%s16] sm:$0x1]
  %v1629 = vsel %vm94, %v1623, 0.0
  %1630 = vadd.xlane.f32.xlu0 %v1629
  %v1631 = vpop.xlane.xlu0 %1630
  %v1632 = vsel %vm94, %v1624, 0.0
  %1633 = vadd.xlane.f32.xlu0 %v1632
  %v1634 = vpop.xlane.xlu0 %1633
  %v1635 = vsel %vm94, %v1625, 0.0
  %1636 = vadd.xlane.f32.xlu0 %v1635
  %v1637 = vpop.xlane.xlu0 %1636
  %v1638 = vsel %vm94, %v1626, 0.0
  %1639 = vadd.xlane.f32.xlu0 %v1638
  %v1640 = vpop.xlane.xlu0 %1639
  %v1641 = vmul.f32 %v1631, %v1381
  %v1642 = vmul.f32 %v1634, %v1381
  %v1643 = vmul.f32 %v1637, %v1381
  %v1644 = vmul.f32 %v1640, %v1381
  %v1645 = vsub.f32 %v1623, %v1641
  %v1646 = vsub.f32 %v1624, %v1642
  %v1647 = vsub.f32 %v1625, %v1643
  %v1648 = vsub.f32 %v1626, %v1644
  %v1649 = vmul.f32 %v1645, %v1645
  %v1650 = vmul.f32 %v1646, %v1646
  %v1651 = vmul.f32 %v1647, %v1647
  %v1652 = vmul.f32 %v1648, %v1648
  %v1653 = vsel %vm94, %v1649, 0.0
  %1654 = vadd.xlane.f32.xlu0 %v1653
  %v1655 = vpop.xlane.xlu0 %1654
  %v1656 = vsel %vm94, %v1650, 0.0
  %1657 = vadd.xlane.f32.xlu0 %v1656
  %v1658 = vpop.xlane.xlu0 %1657
  %v1659 = vsel %vm94, %v1651, 0.0
  %1660 = vadd.xlane.f32.xlu0 %v1659
  %v1661 = vpop.xlane.xlu0 %1660
  %v1662 = vsel %vm94, %v1652, 0.0
  %1663 = vadd.xlane.f32.xlu0 %v1662
  %v1664 = vpop.xlane.xlu0 %1663
  %v1665 = vmul.f32 %v1655, %v1381
  %v1666 = vmul.f32 %v1658, %v1381
  %v1667 = vmul.f32 %v1661, %v1381
  %v1668 = vmul.f32 %v1664, %v1381
  %v1669 = vadd.f32 %v1665, 1e-05
  %v1670 = vadd.f32 %v1666, 1e-05
  %v1671 = vadd.f32 %v1667, 1e-05
  %v1672 = vadd.f32 %v1668, 1e-05
  %v1673 = vrsqrt.pop %v1669
  %v1674 = vrsqrt.pop %v1670
  %v1675 = vrsqrt.pop %v1671
  %v1676 = vrsqrt.pop %v1672
  %v1677 = vmul.f32 %v1645, %v1673
  %v1678 = vmul.f32 %v1646, %v1674
  %v1679 = vmul.f32 %v1647, %v1675
  %v1680 = vmul.f32 %v1648, %v1676
  %v1682 = vlaneseq
  %v1683 = vshrl.u32 %v1682, 7
  %v1684 = vsub.s32 0, %v1683
  %v1685 = vrot.slane %v1627, %v1684
  %v1687 = vmul.f32 %v1677, %v1685
  %v1688 = vmul.f32 %v1678, %v1685
  %v1689 = vmul.f32 %v1679, %v1685
  %v1690 = vmul.f32 %v1680, %v1685
  %v1692 = vlaneseq
  %v1693 = vshrl.u32 %v1692, 7
  %v1694 = vsub.s32 0, %v1693
  %v1695 = vrot.slane %v1628, %v1694
  %v1697 = vadd.f32 %v1687, %v1695
  %v1698 = vadd.f32 %v1688, %v1695
  %v1699 = vadd.f32 %v1689, %v1695
  %v1700 = vadd.f32 %v1690, %v1695
  %1701 = vst.msk [vmem:[%s17] sm:$0xff] %vm94, %v1697
  %1702 = vst.msk [vmem:[%s17 + $0x8] sm:$0xff] %vm94, %v1698
  %1703 = vst.msk [vmem:[%s17 + $0x10] sm:$0xff] %vm94, %v1699
  %1704 = vst.msk [vmem:[%s17 + $0x18] sm:$0xff] %vm94, %v1700
  // Predicated region
  $region70: #{transformer_encoder_layer.1} parent=0 // pred_check
    _
  $region71: #{transformer_encoder_layer.1} parent=0 // pred_check_branch
    %1706 = sbr.rel (0) target = $region73
  $region72: #{transformer_encoder_layer.1} parent=0 // pred_region
    _
  $region73: #{transformer_encoder_layer.1} parent=0 // pred_fallthru
    _
  // Predicated region
  $region74: #{transformer_encoder_layer.1} parent=0 // pred_check
    _
  $region75: #{transformer_encoder_layer.1} parent=0 // pred_check_branch
    %1708 = sbr.rel (0) target = $region77
  $region76: #{transformer_encoder_layer.1} parent=0 // pred_region
    _
  $region77: #{transformer_encoder_layer.1} parent=0 // pred_fallthru
    _

</llo_original>
